<compile_context>
chip_gen: v5e
topology: v5e:2x2
jax: 0.10.0
libtpu: 0.0.40
codegen_flags: <defaults>
</compile_context>

<pallas_src>
import functools
import math

import jax
import jax.numpy as jnp
from jax.experimental import pallas as pl
from jax.experimental.pallas import tpu as pltpu


# --------------------------- Pass 1: K/V projection --------------------------

def _kv_proj_kernel(k_ref, v_ref, w_ref, b_ref, kh_ref, vh_ref,
                    *, num_heads, head_dim):
    """Project one (batch, kv-tile): x @ W^T + b, then split heads.

    w_ref : (2, D, D) bf16 = [W_k^T, W_v^T]   (in x out layout)
    b_ref : (2, D)    f32  = [b_k, b_v]
    kh_ref / vh_ref : (1, H, tile, Dh) bf16 outputs (head-split layout).
    """
    tile = k_ref.shape[1]
    out_dtype = kh_ref.dtype
    biases = b_ref[...]

    def project(x, idx):
        y = jnp.dot(x, w_ref[idx], preferred_element_type=jnp.float32)
        y = y + biases[idx:idx + 1, :]
        # TODO(synk): pltpu.einshape could fuse this reshape+transpose; it is
        # now outside the attention inner loop, so plain transpose is fine.
        y = jnp.transpose(y.reshape(tile, num_heads, head_dim), (1, 0, 2))
        return y.astype(out_dtype)

    kh_ref[0] = project(k_ref[0], 0)
    vh_ref[0] = project(v_ref[0], 1)


# ----------------------------- Pass 2: attention ------------------------------

def _attn_kernel(q_ref, kh_ref, vh_ref, w_ref, b_ref, o_ref,
                 qh_scr, m_scr, l_scr, acc_scr,
                 *, num_heads, head_dim, scale):
    """One (batch, q-tile, kv-tile) step of flash multi-head attention.

    q_ref         : (1, TQ, D) bf16 raw queries.
    kh_ref/vh_ref : (1, H, TK, Dh) bf16 pre-projected, head-split keys/values.
    w_ref         : (2, D, D) bf16 = [W_q^T, W_o^T];  b_ref: (2, D) f32.
    """
    j = pl.program_id(2)
    compute_dtype = w_ref.dtype
    tq = q_ref.shape[1]
    d_model = num_heads * head_dim
    biases = b_ref[...]

    # ---- per-q-tile init: project Q once (softmax scale folded in), reset state.
    @pl.when(j == 0)
    def _init():
        qp = jnp.dot(q_ref[0], w_ref[0], preferred_element_type=jnp.float32)
        qp = (qp + biases[0:1, :]) * scale
        qh_scr[...] = jnp.transpose(
            qp.reshape(tq, num_heads, head_dim), (1, 0, 2)).astype(compute_dtype)
        m_scr[...] = jnp.full_like(m_scr, -jnp.inf)
        l_scr[...] = jnp.zeros_like(l_scr)
        acc_scr[...] = jnp.zeros_like(acc_scr)

    # ---- head-batched scores + online softmax (f32 state). ----
    # TODO(synk): optional attention `mask` argument (mask=None path only); when
    # added, guard the reciprocal against fully-masked rows (l == 0).
    kh = kh_ref[0]                                                   # (H, TK, Dh)
    vh = vh_ref[0]
    qh = qh_scr[...]                                                 # (H, TQ, Dh)
    s = jnp.einsum("hqd,hkd->hqk", qh, kh,
                   preferred_element_type=jnp.float32)               # (H, TQ, TK)

    m_prev = m_scr[...]
    m_new = jnp.maximum(m_prev, jnp.max(s, axis=-1, keepdims=True))
    alpha = jnp.exp(m_prev - m_new)
    p = jnp.exp(s - m_new)
    l_scr[...] = alpha * l_scr[...] + jnp.sum(p, axis=-1, keepdims=True)
    acc_scr[...] = alpha * acc_scr[...] + jnp.einsum(
        "hqk,hkd->hqd", p.astype(compute_dtype), vh,
        preferred_element_type=jnp.float32)
    m_scr[...] = m_new

    # ---- epilogue: normalize, merge heads, output projection. ----
    @pl.when(j == pl.num_programs(2) - 1)
    def _finalize():
        inv_l = pl.reciprocal(l_scr[...], approx=True)               # EUP vrcp
        attn = acc_scr[...] * inv_l                                  # (H, TQ, Dh)
        attn2d = jnp.transpose(attn, (1, 0, 2)).reshape(tq, d_model)
        out = jnp.dot(attn2d.astype(compute_dtype), w_ref[1],
                      preferred_element_type=jnp.float32) + biases[1:2, :]
        o_ref[0] = out.astype(o_ref.dtype)


# --------------------------------- wrappers -----------------------------------

def _vmem_limit(estimated_bytes):
    # Explicit scoped-VMEM limit: v5e's 16 MiB default is too small for the
    # intended tiles; clamp to a range that is safe on v7x's 64 MiB physical.
    return int(min(64 * 1024 * 1024, max(32 * 1024 * 1024, 2 * estimated_bytes)))


def _mha_two_pass(q, k, v, w_kv, b_kv, w_qo, b_qo, *, num_heads, head_dim,
                  tq, tk, tp, compute_dtype, out_dtype, single_buffer_weights):
    B, S, D = q.shape
    H, Dh = num_heads, head_dim
    out_itemsize = jnp.dtype(out_dtype).itemsize

    def const_spec(shape, index_map):
        if single_buffer_weights:
            # Constant index map -> one resident VMEM buffer is enough.
            return pl.BlockSpec(shape, index_map, pipeline_mode=pl.Buffered(1))
        return pl.BlockSpec(shape, index_map)

    weight_bufs = 1 if single_buffer_weights else 2

    # ------------------ Pass 1: K/V projection + head split. ------------------
    proj_vmem = (2 * 2 * tp * D * 2                  # k, v input blocks (double-buffered)
                 + 2 * 2 * H * tp * Dh * 2           # kh, vh output blocks
                 + weight_bufs * 2 * D * D * 2       # stacked W_k^T, W_v^T
                 + weight_bufs * 2 * D * 4           # biases
                 + 4 * tp * D * 4)                   # f32 projection temporaries
    proj_cost = pl.CostEstimate(
        flops=int(2 * 2 * B * S * D * D),
        transcendentals=0,
        bytes_accessed=int(2 * 2 * B * S * D * 2 + 2 * D * D * 2))

    kh, vh = pl.pallas_call(
        functools.partial(_kv_proj_kernel, num_heads=H, head_dim=Dh),
        out_shape=(jax.ShapeDtypeStruct((B, H, S, Dh), compute_dtype),
                   jax.ShapeDtypeStruct((B, H, S, Dh), compute_dtype)),
        grid_spec=pltpu.PrefetchScalarGridSpec(
            num_scalar_prefetch=0,
            grid=(B, S // tp),
            in_specs=[pl.BlockSpec((1, tp, D), lambda b, t: (b, t, 0)),
                      pl.BlockSpec((1, tp, D), lambda b, t: (b, t, 0)),
                      const_spec((2, D, D), lambda b, t: (0, 0, 0)),
                      const_spec((2, D), lambda b, t: (0, 0))],
            out_specs=[pl.BlockSpec((1, H, tp, Dh), lambda b, t: (b, 0, t, 0)),
                       pl.BlockSpec((1, H, tp, Dh), lambda b, t: (b, 0, t, 0))]),
        compiler_params=pltpu.CompilerParams(
            dimension_semantics=("parallel", "parallel"),
            vmem_limit_bytes=_vmem_limit(proj_vmem)),
        cost_estimate=proj_cost,
    )(k, v, w_kv, b_kv)

    # ------------- Pass 2: flash attention + output projection. -------------
    attn_vmem = (2 * tq * D * 2                      # q blocks
                 + 2 * 2 * H * tk * Dh * 2           # kh, vh blocks
                 + 2 * tq * D * out_itemsize         # output blocks
                 + weight_bufs * 2 * D * D * 2       # stacked W_q^T, W_o^T
                 + weight_bufs * 2 * D * 4           # biases
                 + H * tq * Dh * 2                   # qh scratch (bf16)
                 + 2 * H * tq * 4                    # m, l scratch
                 + H * tq * Dh * 4                   # acc scratch
                 + 3 * H * tq * tk * 4)              # live score temporaries
    attn_cost = pl.CostEstimate(
        flops=int(4 * B * S * S * D + 4 * B * S * D * D),
        transcendentals=int(B * H * S * S),
        bytes_accessed=int(B * S * D * 2
                           + 2 * B * (S // tq) * S * D * 2
                           + B * S * D * out_itemsize
                           + 2 * D * D * 2))

    return pl.pallas_call(
        functools.partial(_attn_kernel, num_heads=H, head_dim=Dh,
                          scale=1.0 / math.sqrt(Dh)),
        out_shape=jax.ShapeDtypeStruct((B, S, D), out_dtype),
        grid_spec=pltpu.PrefetchScalarGridSpec(
            num_scalar_prefetch=0,
            grid=(B, S // tq, S // tk),
            in_specs=[pl.BlockSpec((1, tq, D), lambda b, i, j: (b, i, 0)),
                      pl.BlockSpec((1, H, tk, Dh), lambda b, i, j: (b, 0, j, 0)),
                      pl.BlockSpec((1, H, tk, Dh), lambda b, i, j: (b, 0, j, 0)),
                      const_spec((2, D, D), lambda b, i, j: (0, 0, 0)),
                      const_spec((2, D), lambda b, i, j: (0, 0))],
            out_specs=pl.BlockSpec((1, tq, D), lambda b, i, j: (b, i, 0)),
            scratch_shapes=[
                pltpu.VMEM((H, tq, Dh), compute_dtype),   # scaled, head-split Q
                pltpu.VMEM((H, tq, 1), jnp.float32),      # running max
                pltpu.VMEM((H, tq, 1), jnp.float32),      # running denominator
                pltpu.VMEM((H, tq, Dh), jnp.float32),     # running numerator
            ]),
        compiler_params=pltpu.CompilerParams(
            dimension_semantics=("parallel", "parallel", "arbitrary"),
            vmem_limit_bytes=_vmem_limit(attn_vmem)),
        cost_estimate=attn_cost,
    )(q, kh, vh, w_qo, b_qo)


def multi_head_attention(q, k, v, params, *, num_heads,
                         q_tile=256, kv_tile=256, proj_tile=512,
                         compute_dtype=jnp.bfloat16, out_dtype=jnp.bfloat16):
    """q, k, v: (B, S, D) float32.  params: dict of torch-convention weights."""
    B, S, D = q.shape
    assert D % num_heads == 0, "d_model must be divisible by num_heads"
    head_dim = D // num_heads

    tq = min(q_tile, S)
    tk = min(kv_tile, S)
    tp = min(proj_tile, S)
    # TODO(synk): pad/mask ragged sequence lengths; for now require even tiling.
    assert S % tq == 0 and S % tk == 0 and S % tp == 0

    # nn.Linear stores W as (out, in); kernels compute x @ W^T.  Pre-transpose
    # once on the host, cast matmul operands to bf16, keep biases f32.
    w_kv = jnp.stack([params["W_k"].T, params["W_v"].T]).astype(compute_dtype)
    b_kv = jnp.stack([params["b_k"], params["b_v"]]).astype(jnp.float32)
    w_qo = jnp.stack([params["W_q"].T, params["W_o"].T]).astype(compute_dtype)
    b_qo = jnp.stack([params["b_q"], params["b_o"]]).astype(jnp.float32)

    qc = q.astype(compute_dtype)
    kc = k.astype(compute_dtype)
    vc = v.astype(compute_dtype)

    run = functools.partial(_mha_two_pass, qc, kc, vc, w_kv, b_kv, w_qo, b_qo,
                            num_heads=num_heads, head_dim=head_dim,
                            tq=tq, tk=tk, tp=tp,
                            compute_dtype=compute_dtype, out_dtype=out_dtype)
    try:
        # Preferred: constant-index weight/bias blocks single-buffered.
        return run(single_buffer_weights=True)
    except Exception:
        # TODO(synk): pl.Buffered(1) unsupported on this jax build; fall back to
        # default double buffering (correctness unaffected, slightly more VMEM).
        return run(single_buffer_weights=False)


# ------------------------------ reference & demo ------------------------------

def _reference_mha(q, k, v, params, *, num_heads):
    """Plain-JAX f32 reference matching the PyTorch forward exactly."""
    B, S, D = q.shape
    hd = D // num_heads

    def lin(x, w, b):
        return x @ w.T + b

    Q = lin(q, params["W_q"], params["b_q"])
    K = lin(k, params["W_k"], params["b_k"])
    V = lin(v, params["W_v"], params["b_v"])

    def split(x):
        return x.reshape(B, S, num_heads, hd).transpose(0, 2, 1, 3)

    Qh, Kh, Vh = split(Q), split(K), split(V)
    scores = jnp.einsum("bhqd,bhkd->bhqk", Qh, Kh) / jnp.sqrt(jnp.float32(hd))
    attn = jax.nn.softmax(scores, axis=-1)
    out = jnp.einsum("bhqk,bhkd->bhqd", attn, Vh)
    out = out.transpose(0, 2, 1, 3).reshape(B, S, D)
    return lin(out, params["W_o"], params["b_o"])


def _init_params(key, d_model):
    ks = jax.random.split(key, 8)
    scale = 1.0 / jnp.sqrt(jnp.float32(d_model))
    return {
        "W_q": jax.random.uniform(ks[0], (d_model, d_model), jnp.float32, -scale, scale),
        "b_q": jax.random.uniform(ks[1], (d_model,), jnp.float32, -scale, scale),
        "W_k": jax.random.uniform(ks[2], (d_model, d_model), jnp.float32, -scale, scale),
        "b_k": jax.random.uniform(ks[3], (d_model,), jnp.float32, -scale, scale),
        "W_v": jax.random.uniform(ks[4], (d_model, d_model), jnp.float32, -scale, scale),
        "b_v": jax.random.uniform(ks[5], (d_model,), jnp.float32, -scale, scale),
        "W_o": jax.random.uniform(ks[6], (d_model, d_model), jnp.float32, -scale, scale),
        "b_o": jax.random.uniform(ks[7], (d_model,), jnp.float32, -scale, scale),
    }


if __name__ == "__main__":
    batch, seq, d_model, num_heads = 2, 8, 32, 4

    key = jax.random.PRNGKey(0)
    kq, kk, kv, kp = jax.random.split(key, 4)
    q = jax.random.normal(kq, (batch, seq, d_model), jnp.float32)
    k = jax.random.normal(kk, (batch, seq, d_model), jnp.float32)
    v = jax.random.normal(kv, (batch, seq, d_model), jnp.float32)
    params = _init_params(kp, d_model)

    out = multi_head_attention(q, k, v, params, num_heads=num_heads)
    out = jax.block_until_ready(out)

    ref = _reference_mha(q, k, v, params, num_heads=num_heads)
    assert out.shape == (batch, seq, d_model)
    # bf16 matmul operands + bf16 output + approx reciprocal => relaxed tolerance.
    max_err = jnp.max(jnp.abs(out.astype(jnp.float32) - ref))
    assert max_err < 1e-1, f"max abs err {max_err}"

    print("KERNEL_OK")
</pallas_src>

<mosaic_0001>
module attributes {stable_mosaic.version = 11 : i64} {
  func.func @_kv_proj_kernel(%arg0: i32, %arg1: i32, %arg2: memref<1x8x32xbf16, #tpu.memory_space<vmem>>, %arg3: memref<1x8x32xbf16, #tpu.memory_space<vmem>>, %arg4: memref<2x32x32xbf16, #tpu.memory_space<vmem>>, %arg5: memref<2x32xf32, #tpu.memory_space<vmem>>, %arg6: memref<1x4x8x8xbf16, #tpu.memory_space<vmem>>, %arg7: memref<1x4x8x8xbf16, #tpu.memory_space<vmem>>) attributes {dimension_semantics = [#tpu.dimension_semantics<parallel>, #tpu.dimension_semantics<parallel>], iteration_bounds = array<i64: 2, 1>, scalar_prefetch = 0 : i64, scratch_operands = 0 : i64, tpu.core_type = #tpu.core_type<tc>, window_params = [{transform_indices = @transform_0, window_bounds = array<i64: 1, 8, 32>}, {transform_indices = @transform_1, window_bounds = array<i64: 1, 8, 32>}, {pipeline_mode = #tpu.pipeline_mode<synchronous>, transform_indices = @transform_2, window_bounds = array<i64: 2, 32, 32>}, {pipeline_mode = #tpu.pipeline_mode<synchronous>, transform_indices = @transform_3, window_bounds = array<i64: 2, 32>}, {transform_indices = @transform_4, window_bounds = array<i64: 1, 4, 8, 8>}, {transform_indices = @transform_5, window_bounds = array<i64: 1, 4, 8, 8>}]} {
    %c0 = arith.constant 0 : index
    %c0_0 = arith.constant 0 : index
    %0 = vector.load %arg5[%c0, %c0_0] : memref<2x32xf32, #tpu.memory_space<vmem>>, vector<2x32xf32>
    %c0_1 = arith.constant 0 : index
    %c0_2 = arith.constant 0 : index
    %c0_3 = arith.constant 0 : index
    %1 = vector.load %arg2[%c0_1, %c0_2, %c0_3] : memref<1x8x32xbf16, #tpu.memory_space<vmem>>, vector<1x8x32xbf16>
    %2 = vector.shape_cast %1 : vector<1x8x32xbf16> to vector<8x32xbf16>
    %c0_4 = arith.constant 0 : index
    %c0_5 = arith.constant 0 : index
    %c0_6 = arith.constant 0 : index
    %3 = vector.load %arg4[%c0_4, %c0_5, %c0_6] : memref<2x32x32xbf16, #tpu.memory_space<vmem>>, vector<1x32x32xbf16>
    %4 = vector.shape_cast %3 : vector<1x32x32xbf16> to vector<32x32xbf16>
    %cst = arith.constant dense<0.000000e+00> : vector<8x32xf32>
    %5 = tpu.matmul %2, %4, %cst {dimension_numbers = #tpu.dot_dimension_numbers<[1], [0], [0], [1], [0, 0, 1, 1], [], []>} : vector<8x32xbf16>, vector<32x32xbf16>, vector<8x32xf32> -> vector<8x32xf32>
    %6 = vector.extract_strided_slice %0 {offsets = [0, 0], sizes = [1, 32], strides = [1, 1]} : vector<2x32xf32> to vector<1x32xf32>
    %7 = vector.broadcast %6 : vector<1x32xf32> to vector<8x32xf32>
    %8 = arith.addf %5, %7 : vector<8x32xf32>
    %9 = vector.shape_cast %8 : vector<8x32xf32> to vector<8x4x8xf32>
    %10 = tpu.transpose %9, [1, 0, 2] : vector<8x4x8xf32> -> vector<4x8x8xf32>
    %11 = arith.truncf %10 : vector<4x8x8xf32> to vector<4x8x8xbf16>
    %c0_7 = arith.constant 0 : index
    %c0_8 = arith.constant 0 : index
    %c0_9 = arith.constant 0 : index
    %c0_10 = arith.constant 0 : index
    %12 = vector.load %arg6[%c0_7, %c0_8, %c0_9, %c0_10] : memref<1x4x8x8xbf16, #tpu.memory_space<vmem>>, vector<1x4x8x8xbf16>
    %13 = vector.shape_cast %12 : vector<1x4x8x8xbf16> to vector<4x8x8xbf16>
    %14 = vector.shape_cast %11 : vector<4x8x8xbf16> to vector<1x4x8x8xbf16>
    tpu.vector_store %arg6[%c0_7, %c0_8, %c0_9, %c0_10], %14 {strides = array<i32>} : memref<1x4x8x8xbf16, #tpu.memory_space<vmem>>, vector<1x4x8x8xbf16>,
    %c0_11 = arith.constant 0 : index
    %c0_12 = arith.constant 0 : index
    %c0_13 = arith.constant 0 : index
    %15 = vector.load %arg3[%c0_11, %c0_12, %c0_13] : memref<1x8x32xbf16, #tpu.memory_space<vmem>>, vector<1x8x32xbf16>
    %16 = vector.shape_cast %15 : vector<1x8x32xbf16> to vector<8x32xbf16>
    %c1 = arith.constant 1 : index
    %c0_14 = arith.constant 0 : index
    %c0_15 = arith.constant 0 : index
    %17 = vector.load %arg4[%c1, %c0_14, %c0_15] : memref<2x32x32xbf16, #tpu.memory_space<vmem>>, vector<1x32x32xbf16>
    %18 = vector.shape_cast %17 : vector<1x32x32xbf16> to vector<32x32xbf16>
    %cst_16 = arith.constant dense<0.000000e+00> : vector<8x32xf32>
    %19 = tpu.matmul %16, %18, %cst_16 {dimension_numbers = #tpu.dot_dimension_numbers<[1], [0], [0], [1], [0, 0, 1, 1], [], []>} : vector<8x32xbf16>, vector<32x32xbf16>, vector<8x32xf32> -> vector<8x32xf32>
    %20 = vector.extract_strided_slice %0 {offsets = [1, 0], sizes = [1, 32], strides = [1, 1]} : vector<2x32xf32> to vector<1x32xf32>
    %21 = vector.broadcast %20 : vector<1x32xf32> to vector<8x32xf32>
    %22 = arith.addf %19, %21 : vector<8x32xf32>
    %23 = vector.shape_cast %22 : vector<8x32xf32> to vector<8x4x8xf32>
    %24 = tpu.transpose %23, [1, 0, 2] : vector<8x4x8xf32> -> vector<4x8x8xf32>
    %25 = arith.truncf %24 : vector<4x8x8xf32> to vector<4x8x8xbf16>
    %c0_17 = arith.constant 0 : index
    %c0_18 = arith.constant 0 : index
    %c0_19 = arith.constant 0 : index
    %c0_20 = arith.constant 0 : index
    %26 = vector.load %arg7[%c0_17, %c0_18, %c0_19, %c0_20] : memref<1x4x8x8xbf16, #tpu.memory_space<vmem>>, vector<1x4x8x8xbf16>
    %27 = vector.shape_cast %26 : vector<1x4x8x8xbf16> to vector<4x8x8xbf16>
    %28 = vector.shape_cast %25 : vector<4x8x8xbf16> to vector<1x4x8x8xbf16>
    tpu.vector_store %arg7[%c0_17, %c0_18, %c0_19, %c0_20], %28 {strides = array<i32>} : memref<1x4x8x8xbf16, #tpu.memory_space<vmem>>, vector<1x4x8x8xbf16>,
    return
  }
  func.func @transform_0(%arg0: i32, %arg1: i32) -> (i32, i32, i32) {
    %c0_i32 = arith.constant 0 : i32
    %c0_i32_0 = arith.constant 0 : i32
    return %arg0, %arg1, %c0_i32 : i32, i32, i32
  }
  func.func @transform_1(%arg0: i32, %arg1: i32) -> (i32, i32, i32) {
    %c0_i32 = arith.constant 0 : i32
    %c0_i32_0 = arith.constant 0 : i32
    return %arg0, %arg1, %c0_i32 : i32, i32, i32
  }
  func.func @transform_2(%arg0: i32, %arg1: i32) -> (i32, i32, i32) {
    %c0_i32 = arith.constant 0 : i32
    %c0_i32_0 = arith.constant 0 : i32
    %c0_i32_1 = arith.constant 0 : i32
    %c0_i32_2 = arith.constant 0 : i32
    return %c0_i32, %c0_i32_0, %c0_i32_1 : i32, i32, i32
  }
  func.func @transform_3(%arg0: i32, %arg1: i32) -> (i32, i32) {
    %c0_i32 = arith.constant 0 : i32
    %c0_i32_0 = arith.constant 0 : i32
    %c0_i32_1 = arith.constant 0 : i32
    return %c0_i32, %c0_i32_0 : i32, i32
  }
  func.func @transform_4(%arg0: i32, %arg1: i32) -> (i32, i32, i32, i32) {
    %c0_i32 = arith.constant 0 : i32
    %c0_i32_0 = arith.constant 0 : i32
    %c0_i32_1 = arith.constant 0 : i32
    return %arg0, %c0_i32, %arg1, %c0_i32_0 : i32, i32, i32, i32
  }
  func.func @transform_5(%arg0: i32, %arg1: i32) -> (i32, i32, i32, i32) {
    %c0_i32 = arith.constant 0 : i32
    %c0_i32_0 = arith.constant 0 : i32
    %c0_i32_1 = arith.constant 0 : i32
    return %arg0, %c0_i32, %arg1, %c0_i32_0 : i32, i32, i32, i32
  }
}

module attributes {stable_mosaic.version = 11 : i64} {
  func.func @_kv_proj_kernel(%arg0: i32, %arg1: i32, %arg2: memref<1x8x32xbf16, #tpu.memory_space<vmem>>, %arg3: memref<1x8x32xbf16, #tpu.memory_space<vmem>>, %arg4: memref<2x32x32xbf16, #tpu.memory_space<vmem>>, %arg5: memref<2x32xf32, #tpu.memory_space<vmem>>, %arg6: memref<1x4x8x8xbf16, #tpu.memory_space<vmem>>, %arg7: memref<1x4x8x8xbf16, #tpu.memory_space<vmem>>) attributes {dimension_semantics = [#tpu.dimension_semantics<parallel>, #tpu.dimension_semantics<parallel>], iteration_bounds = array<i64: 2, 1>, scalar_prefetch = 0 : i64, scratch_operands = 0 : i64, tpu.core_type = #tpu.core_type<tc>, window_params = [{transform_indices = @transform_0, window_bounds = array<i64: 1, 8, 32>}, {transform_indices = @transform_1, window_bounds = array<i64: 1, 8, 32>}, {pipeline_mode = #tpu.pipeline_mode<synchronous>, transform_indices = @transform_2, window_bounds = array<i64: 2, 32, 32>}, {pipeline_mode = #tpu.pipeline_mode<synchronous>, transform_indices = @transform_3, window_bounds = array<i64: 2, 32>}, {transform_indices = @transform_4, window_bounds = array<i64: 1, 4, 8, 8>}, {transform_indices = @transform_5, window_bounds = array<i64: 1, 4, 8, 8>}]} {
    %c0 = arith.constant 0 : index
    %c0_0 = arith.constant 0 : index
    %0 = vector.load %arg5[%c0, %c0_0] : memref<2x32xf32, #tpu.memory_space<vmem>>, vector<2x32xf32>
    %c0_1 = arith.constant 0 : index
    %c0_2 = arith.constant 0 : index
    %c0_3 = arith.constant 0 : index
    %1 = vector.load %arg2[%c0_1, %c0_2, %c0_3] : memref<1x8x32xbf16, #tpu.memory_space<vmem>>, vector<1x8x32xbf16>
    %2 = vector.shape_cast %1 : vector<1x8x32xbf16> to vector<8x32xbf16>
    %c0_4 = arith.constant 0 : index
    %c0_5 = arith.constant 0 : index
    %c0_6 = arith.constant 0 : index
    %3 = vector.load %arg4[%c0_4, %c0_5, %c0_6] : memref<2x32x32xbf16, #tpu.memory_space<vmem>>, vector<1x32x32xbf16>
    %4 = vector.shape_cast %3 : vector<1x32x32xbf16> to vector<32x32xbf16>
    %cst = arith.constant dense<0.000000e+00> : vector<8x32xf32>
    %5 = tpu.matmul %2, %4, %cst {dimension_numbers = #tpu.dot_dimension_numbers<[1], [0], [0], [1], [0, 0, 1, 1], [], []>} : vector<8x32xbf16>, vector<32x32xbf16>, vector<8x32xf32> -> vector<8x32xf32>
    %6 = vector.extract_strided_slice %0 {offsets = [0, 0], sizes = [1, 32], strides = [1, 1]} : vector<2x32xf32> to vector<1x32xf32>
    %7 = vector.broadcast %6 : vector<1x32xf32> to vector<8x32xf32>
    %8 = arith.addf %5, %7 : vector<8x32xf32>
    %9 = vector.shape_cast %8 : vector<8x32xf32> to vector<8x4x8xf32>
    %10 = tpu.transpose %9, [1, 0, 2] : vector<8x4x8xf32> -> vector<4x8x8xf32>
    %11 = arith.truncf %10 : vector<4x8x8xf32> to vector<4x8x8xbf16>
    %c0_7 = arith.constant 0 : index
    %c0_8 = arith.constant 0 : index
    %c0_9 = arith.constant 0 : index
    %c0_10 = arith.constant 0 : index
    %12 = vector.load %arg6[%c0_7, %c0_8, %c0_9, %c0_10] : memref<1x4x8x8xbf16, #tpu.memory_space<vmem>>, vector<1x4x8x8xbf16>
    %13 = vector.shape_cast %12 : vector<1x4x8x8xbf16> to vector<4x8x8xbf16>
    %14 = vector.shape_cast %11 : vector<4x8x8xbf16> to vector<1x4x8x8xbf16>
    tpu.vector_store %arg6[%c0_7, %c0_8, %c0_9, %c0_10], %14 {strides = array<i32>} : memref<1x4x8x8xbf16, #tpu.memory_space<vmem>>, vector<1x4x8x8xbf16>,
    %c0_11 = arith.constant 0 : index
    %c0_12 = arith.constant 0 : index
    %c0_13 = arith.constant 0 : index
    %15 = vector.load %arg3[%c0_11, %c0_12, %c0_13] : memref<1x8x32xbf16, #tpu.memory_space<vmem>>, vector<1x8x32xbf16>
    %16 = vector.shape_cast %15 : vector<1x8x32xbf16> to vector<8x32xbf16>
    %c1 = arith.constant 1 : index
    %c0_14 = arith.constant 0 : index
    %c0_15 = arith.constant 0 : index
    %17 = vector.load %arg4[%c1, %c0_14, %c0_15] : memref<2x32x32xbf16, #tpu.memory_space<vmem>>, vector<1x32x32xbf16>
    %18 = vector.shape_cast %17 : vector<1x32x32xbf16> to vector<32x32xbf16>
    %cst_16 = arith.constant dense<0.000000e+00> : vector<8x32xf32>
    %19 = tpu.matmul %16, %18, %cst_16 {dimension_numbers = #tpu.dot_dimension_numbers<[1], [0], [0], [1], [0, 0, 1, 1], [], []>} : vector<8x32xbf16>, vector<32x32xbf16>, vector<8x32xf32> -> vector<8x32xf32>
    %20 = vector.extract_strided_slice %0 {offsets = [1, 0], sizes = [1, 32], strides = [1, 1]} : vector<2x32xf32> to vector<1x32xf32>
    %21 = vector.broadcast %20 : vector<1x32xf32> to vector<8x32xf32>
    %22 = arith.addf %19, %21 : vector<8x32xf32>
    %23 = vector.shape_cast %22 : vector<8x32xf32> to vector<8x4x8xf32>
    %24 = tpu.transpose %23, [1, 0, 2] : vector<8x4x8xf32> -> vector<4x8x8xf32>
    %25 = arith.truncf %24 : vector<4x8x8xf32> to vector<4x8x8xbf16>
    %c0_17 = arith.constant 0 : index
    %c0_18 = arith.constant 0 : index
    %c0_19 = arith.constant 0 : index
    %c0_20 = arith.constant 0 : index
    %26 = vector.load %arg7[%c0_17, %c0_18, %c0_19, %c0_20] : memref<1x4x8x8xbf16, #tpu.memory_space<vmem>>, vector<1x4x8x8xbf16>
    %27 = vector.shape_cast %26 : vector<1x4x8x8xbf16> to vector<4x8x8xbf16>
    %28 = vector.shape_cast %25 : vector<4x8x8xbf16> to vector<1x4x8x8xbf16>
    tpu.vector_store %arg7[%c0_17, %c0_18, %c0_19, %c0_20], %28 {strides = array<i32>} : memref<1x4x8x8xbf16, #tpu.memory_space<vmem>>, vector<1x4x8x8xbf16>,
    return
  }
  func.func @transform_0(%arg0: i32, %arg1: i32) -> (i32, i32, i32) {
    %c0_i32 = arith.constant 0 : i32
    %c0_i32_0 = arith.constant 0 : i32
    return %arg0, %arg1, %c0_i32 : i32, i32, i32
  }
  func.func @transform_1(%arg0: i32, %arg1: i32) -> (i32, i32, i32) {
    %c0_i32 = arith.constant 0 : i32
    %c0_i32_0 = arith.constant 0 : i32
    return %arg0, %arg1, %c0_i32 : i32, i32, i32
  }
  func.func @transform_2(%arg0: i32, %arg1: i32) -> (i32, i32, i32) {
    %c0_i32 = arith.constant 0 : i32
    %c0_i32_0 = arith.constant 0 : i32
    %c0_i32_1 = arith.constant 0 : i32
    %c0_i32_2 = arith.constant 0 : i32
    return %c0_i32, %c0_i32_0, %c0_i32_1 : i32, i32, i32
  }
  func.func @transform_3(%arg0: i32, %arg1: i32) -> (i32, i32) {
    %c0_i32 = arith.constant 0 : i32
    %c0_i32_0 = arith.constant 0 : i32
    %c0_i32_1 = arith.constant 0 : i32
    return %c0_i32, %c0_i32_0 : i32, i32
  }
  func.func @transform_4(%arg0: i32, %arg1: i32) -> (i32, i32, i32, i32) {
    %c0_i32 = arith.constant 0 : i32
    %c0_i32_0 = arith.constant 0 : i32
    %c0_i32_1 = arith.constant 0 : i32
    return %arg0, %c0_i32, %arg1, %c0_i32_0 : i32, i32, i32, i32
  }
  func.func @transform_5(%arg0: i32, %arg1: i32) -> (i32, i32, i32, i32) {
    %c0_i32 = arith.constant 0 : i32
    %c0_i32_0 = arith.constant 0 : i32
    %c0_i32_1 = arith.constant 0 : i32
    return %arg0, %c0_i32, %arg1, %c0_i32_0 : i32, i32, i32, i32
  }
}

</mosaic_0001>

<llo_original>
// kernel: tpu_custom_call.1
$region0: #{tpu_custom_call.1}
  #allocation0 [shape = 'u32[]', space=smem, size = 0x4, offset = 0x4, fixed_abs, tag = 'smem constant byte address 0x4 - core index']
  #allocation1 [shape = 'u32[72,128]{1,0:T(1,128)}', space=vmem, size = 0x9000, scoped, tag = 'internal scratch']
  %s0 = inlined_call_operand.hbm [shape: bf16[2,8,32], index: 0, kind: input, shape index: {}]
  %s1 = inlined_call_operand.hbm [shape: bf16[2,8,32], index: 1, kind: input, shape index: {}]
  %s2 = inlined_call_operand.hbm [shape: bf16[2,32,32], index: 2, kind: input, shape index: {}]
  %s3 = inlined_call_operand.vmem [shape: f32[2,32], index: 3, kind: input, shape index: {}]
  %s4 = inlined_call_operand.hbm [shape: bf16[2,4,8,8], index: 4, kind: output, shape index: {0}]
  %s5 = inlined_call_operand.hbm [shape: bf16[2,4,8,8], index: 5, kind: output, shape index: {1}]
  %6 = xla_tuple %s4, %s5
  %s7 = sld [smem:[#allocation0]]
  $region69: #{tpu_custom_call.1} parent=0
    _
  %s9 = ssub.s32 1, %s7
  %s10 = scalar_select 0, %s9, %s7
  $region1: #{tpu_custom_call.1} parent=0
    #allocation2 [shape = 'u8[4096]{0}', space=vmem, size = 0x1000, scoped, tag = 'input window, operand 0']
    #allocation3 [shape = 's32[2]{0}', space=sflag, size = 0x8, scoped, tag = 'scoped memory for tpu_custom_call.1']
    #allocation4 [shape = 's32[2]{0}', space=sflag, size = 0x8, scoped, tag = 'scoped memory for tpu_custom_call.1']
    #allocation5 [shape = 'u8[4096]{0}', space=vmem, size = 0x1000, scoped, tag = 'input window, operand 1']
    #allocation6 [shape = 's32[2]{0}', space=sflag, size = 0x8, scoped, tag = 'scoped memory for tpu_custom_call.1']
    #allocation7 [shape = 'u8[16384]{0}', space=vmem, size = 0x4000, scoped, tag = 'input window, operand 2, single buffered']
    #allocation8 [shape = 'u8[16384]{0}', space=vmem, size = 0x4000, scoped, tag = 'output window, operand 0']
    #allocation9 [shape = 'u8[16384]{0}', space=vmem, size = 0x4000, scoped, tag = 'output window, operand 1']
    #allocation10 [shape = 's32[2]{0}', space=sflag, size = 0x8, scoped, tag = 'scoped memory for tpu_custom_call.1']
    %11 = vsyncpa [#allocation3], 0
    %s12 = scalar_lea.sflag [#allocation3], 1
    %13 = vsyncpa %s12, 0
    %14 = vsyncpa [#allocation6], 0
    %s15 = scalar_lea.sflag [#allocation6], 1
    %16 = vsyncpa %s15, 0
    %17 = vsyncpa [#allocation4], 0
    %s18 = scalar_lea.sflag [#allocation4], 1
    %19 = vsyncpa %s18, 0
    %20 = vsyncpa [#allocation10], 0
    %s21 = scalar_lea.sflag [#allocation10], 1
    %22 = vsyncpa %s21, 0
    loop: start=0, step=1, limit=4
    $region2: #{tpu_custom_call.1} parent=1 // loop_pre_header
      _
    $region3: #{tpu_custom_call.1} parent=1 // loop_header
      %s24 = sphi 0, %s28
      %p25 = scmp.ge.s32.totalorder %s24, 4
      %s31 = sphi 0, %s43
      %s32 = sphi 0, %s39
      %s33 = sphi 0, %s31
      %s34 = sphi 0, %s32
      %s35 = sphi 0, %s33
      %s36 = sphi 0, %s34
      %s48 = sphi 0, %s50
      %s51 = sphi 0, %s48
      %s52 = sphi 0, %s51
      %s68 = sphi 0, %s52
      %s76 = sphi 0, %s78
      %s79 = sphi 0, %s76
      %s80 = sphi 0, %s79
      %s96 = sphi 0, %s80
      %s100 = sphi 0, %s100
      %s102 = sphi 0, %s100
      %s103 = sphi 0, %s102
      %s117 = sphi 0, %s103
      %s121 = sphi 0, %s121
      %s123 = sphi 0, %s121
      %s124 = sphi 0, %s123
      %s138 = sphi 0, %s124
      %s146 = sphi 0, %s148
      %s149 = sphi 0, %s146
      %s150 = sphi 0, %s149
      %s166 = sphi 0, %s150
      %s174 = sphi 0, %s176
      %s177 = sphi 0, %s174
      %s178 = sphi 0, %s177
      %s194 = sphi 0, %s178
    $region4: #{tpu_custom_call.1} parent=1 // loop_header_branch
      %27 = sbr.rel (%p25) target = $region8
    $region5: #{tpu_custom_call.1} parent=1 // loop_body
      %s29 = ssub.s32 %s24, 1
      %s30 = ssub.s32 %s24, 2
      %s37 = sadd.s32 1, %s32
      %p38 = scmp.ge.s32.totalorder %s37, 1
      %s39 = scalar_select %p38, 0, %s37
      %s40 = sadd.s32 1, %s31
      %s41 = scalar_select %p38, %s40, %s31
      %p42 = scmp.ge.s32.totalorder %s41, 2
      %s43 = scalar_select %p42, 0, %s41
      %s44 = ssub.s32 %s31, %s43
      %s45 = ssub.s32 %s32, %s39
      %s46 = sor.u32 %s44, %s45
      %p47 = scmp.eq.s32.totalorder %s46, 0
      %s49 = sadd.s32 %s48, 1
      %s50 = scalar_select %p47, %s48, %s49
      %p53 = pneg %p47
      %p54 = scmp.eq.s32.totalorder %s24, 1
      %p55 = por %p53, %p54
      %p56 = scmp.ne.s32.totalorder %s48, %s51
      %p57 = scmp.eq.s32.totalorder %s24, 0
      %p58 = por %p56, %p57
      %p59 = scmp.ne.s32.totalorder %s48, %s51
      %p60 = scmp.eq.s32.totalorder %s29, 1
      %p61 = por %p59, %p60
      %p62 = scmp.ne.s32.totalorder %s51, %s52
      %p63 = scmp.eq.s32.totalorder %s29, 0
      %p64 = por %p62, %p63
      %p65 = scmp.ne.s32.totalorder %s51, %s52
      %p66 = scmp.eq.s32.totalorder %s30, 1
      %p67 = por %p65, %p66
      %p69 = scmp.ne.s32.totalorder %s52, %s68
      %p70 = scmp.eq.s32.totalorder %s30, 0
      %p71 = por %p69, %p70
      %s72 = ssub.s32 %s31, %s43
      %s73 = ssub.s32 %s32, %s39
      %s74 = sor.u32 %s72, %s73
      %p75 = scmp.eq.s32.totalorder %s74, 0
      %s77 = sadd.s32 %s76, 1
      %s78 = scalar_select %p75, %s76, %s77
      %p81 = pneg %p75
      %p82 = scmp.eq.s32.totalorder %s24, 1
      %p83 = por %p81, %p82
      %p84 = scmp.ne.s32.totalorder %s76, %s79
      %p85 = scmp.eq.s32.totalorder %s24, 0
      %p86 = por %p84, %p85
      %p87 = scmp.ne.s32.totalorder %s76, %s79
      %p88 = scmp.eq.s32.totalorder %s29, 1
      %p89 = por %p87, %p88
      %p90 = scmp.ne.s32.totalorder %s79, %s80
      %p91 = scmp.eq.s32.totalorder %s29, 0
      %p92 = por %p90, %p91
      %p93 = scmp.ne.s32.totalorder %s79, %s80
      %p94 = scmp.eq.s32.totalorder %s30, 1
      %p95 = por %p93, %p94
      %p97 = scmp.ne.s32.totalorder %s80, %s96
      %p98 = scmp.eq.s32.totalorder %s30, 0
      %p99 = por %p97, %p98
      %s101 = sadd.s32 %s100, 1
      %p104 = scmp.eq.s32.totalorder %s24, 1
      %p105 = scmp.ne.s32.totalorder %s100, %s102
      %p106 = scmp.eq.s32.totalorder %s24, 0
      %p107 = por %p105, %p106
      %p108 = scmp.ne.s32.totalorder %s100, %s102
      %p109 = scmp.eq.s32.totalorder %s29, 1
      %p110 = por %p108, %p109
      %p111 = scmp.ne.s32.totalorder %s102, %s103
      %p112 = scmp.eq.s32.totalorder %s29, 0
      %p113 = por %p111, %p112
      %p114 = scmp.ne.s32.totalorder %s102, %s103
      %p115 = scmp.eq.s32.totalorder %s30, 1
      %p116 = por %p114, %p115
      %p118 = scmp.ne.s32.totalorder %s103, %s117
      %p119 = scmp.eq.s32.totalorder %s30, 0
      %p120 = por %p118, %p119
      %s122 = sadd.s32 %s121, 1
      %p125 = scmp.eq.s32.totalorder %s24, 1
      %p126 = scmp.ne.s32.totalorder %s121, %s123
      %p127 = scmp.eq.s32.totalorder %s24, 0
      %p128 = por %p126, %p127
      %p129 = scmp.ne.s32.totalorder %s121, %s123
      %p130 = scmp.eq.s32.totalorder %s29, 1
      %p131 = por %p129, %p130
      %p132 = scmp.ne.s32.totalorder %s123, %s124
      %p133 = scmp.eq.s32.totalorder %s29, 0
      %p134 = por %p132, %p133
      %p135 = scmp.ne.s32.totalorder %s123, %s124
      %p136 = scmp.eq.s32.totalorder %s30, 1
      %p137 = por %p135, %p136
      %p139 = scmp.ne.s32.totalorder %s124, %s138
      %p140 = scmp.eq.s32.totalorder %s30, 0
      %p141 = por %p139, %p140
      %s142 = ssub.s32 %s31, %s43
      %s143 = ssub.s32 %s32, %s39
      %s144 = sor.u32 %s142, %s143
      %p145 = scmp.eq.s32.totalorder %s144, 0
      %s147 = sadd.s32 %s146, 1
      %s148 = scalar_select %p145, %s146, %s147
      %p151 = pneg %p145
      %p152 = scmp.eq.s32.totalorder %s24, 1
      %p153 = por %p151, %p152
      %p154 = scmp.ne.s32.totalorder %s146, %s149
      %p155 = scmp.eq.s32.totalorder %s24, 0
      %p156 = por %p154, %p155
      %p157 = scmp.ne.s32.totalorder %s146, %s149
      %p158 = scmp.eq.s32.totalorder %s29, 1
      %p159 = por %p157, %p158
      %p160 = scmp.ne.s32.totalorder %s149, %s150
      %p161 = scmp.eq.s32.totalorder %s29, 0
      %p162 = por %p160, %p161
      %p163 = scmp.ne.s32.totalorder %s149, %s150
      %p164 = scmp.eq.s32.totalorder %s30, 1
      %p165 = por %p163, %p164
      %p167 = scmp.ne.s32.totalorder %s150, %s166
      %p168 = scmp.eq.s32.totalorder %s30, 0
      %p169 = por %p167, %p168
      %s170 = ssub.s32 %s31, %s43
      %s171 = ssub.s32 %s32, %s39
      %s172 = sor.u32 %s170, %s171
      %p173 = scmp.eq.s32.totalorder %s172, 0
      %s175 = sadd.s32 %s174, 1
      %s176 = scalar_select %p173, %s174, %s175
      %p179 = pneg %p173
      %p180 = scmp.eq.s32.totalorder %s24, 1
      %p181 = por %p179, %p180
      %p182 = scmp.ne.s32.totalorder %s174, %s177
      %p183 = scmp.eq.s32.totalorder %s24, 0
      %p184 = por %p182, %p183
      %p185 = scmp.ne.s32.totalorder %s174, %s177
      %p186 = scmp.eq.s32.totalorder %s29, 1
      %p187 = por %p185, %p186
      %p188 = scmp.ne.s32.totalorder %s177, %s178
      %p189 = scmp.eq.s32.totalorder %s29, 0
      %p190 = por %p188, %p189
      %p191 = scmp.ne.s32.totalorder %s177, %s178
      %p192 = scmp.eq.s32.totalorder %s30, 1
      %p193 = por %p191, %p192
      %p195 = scmp.ne.s32.totalorder %s178, %s194
      %p196 = scmp.eq.s32.totalorder %s30, 0
      %p197 = por %p195, %p196
      %p198 = scmp.le.s32.totalorder 1, %s24
      %p199 = scmp.lt.s32.totalorder %s24, 3
      %p200 = pnand %p198, %p199
      %p201 = pneg %p200
      // Predicated region
      $region9: #{tpu_custom_call.1} parent=5 // pred_check
        _
      $region10: #{tpu_custom_call.1} parent=5 // pred_check_branch
        %203 = sbr.rel (%p200) target = $region12
      $region11: #{tpu_custom_call.1} parent=5 // pred_region
        %s204 = ssub.s32 %s24, 1
        // Predicated region
        $region13: #{tpu_custom_call.1} parent=11 // pred_check
          %p205 = pneg %p113
        $region14: #{tpu_custom_call.1} parent=11 // pred_check_branch
          %207 = sbr.rel (%p205) target = $region16
        $region15: #{tpu_custom_call.1} parent=11 // pred_region
          %209 = vsyncadd [#allocation6], 0
          %s210 = sshll.u32 %s2, 4
          %s211 = int_to_ptr.hbm [resolvable:$true] %s210
          %s212 = sshll.u32 [#allocation7], 4
          %s213 = int_to_ptr.vmem [resolvable:$true] %s212
          %218 = dma.hbm_to_vmem [thread:$0]  %s211, 512, %s213, [#allocation6], 64, 64, 4
        $region16: #{tpu_custom_call.1} parent=11 // pred_fallthru
          _
        // Predicated region
        $region17: #{tpu_custom_call.1} parent=11 // pred_check
          %p219 = pneg %p134
        $region18: #{tpu_custom_call.1} parent=11 // pred_check_branch
          %221 = sbr.rel (%p219) target = $region20
        $region19: #{tpu_custom_call.1} parent=11 // pred_region
          _
        $region20: #{tpu_custom_call.1} parent=11 // pred_fallthru
          _
      $region12: #{tpu_custom_call.1} parent=5 // pred_fallthru
        _
      %p222 = scmp.lt.s32.totalorder %s24, 2
      // Predicated region
      $region21: #{tpu_custom_call.1} parent=5 // pred_check
        %p223 = pneg %p222
      $region22: #{tpu_custom_call.1} parent=5 // pred_check_branch
        %225 = sbr.rel (%p223) target = $region24
      $region23: #{tpu_custom_call.1} parent=5 // pred_region
        // Predicated region
        $region25: #{tpu_custom_call.1} parent=23 // pred_check
          %p226 = pneg %p58
        $region26: #{tpu_custom_call.1} parent=23 // pred_check_branch
          %228 = sbr.rel (%p226) target = $region28
        $region27: #{tpu_custom_call.1} parent=23 // pred_region
          %s229 = sand.u32 %s48, 1
          %s230 = scalar_lea.sflag [#allocation3], %s229
          %s231 = sand.u32 %s48, 1
          %s232 = smul.addr %s231, 4
          %s233 = scalar_lea.vmem [#allocation2], %s232
          %235 = vsyncadd %s230, 0
          %s236 = sadd.s32 %s32, %s31
          %s237 = smul.addr %s236, 4
          %s238 = scalar_lea.hbm %s0, %s237
          %s240 = sshll.u32 %s238, 4
          %s241 = int_to_ptr.hbm [resolvable:$true] %s240
          %s242 = sshll.u32 %s233, 4
          %s243 = int_to_ptr.vmem [resolvable:$true] %s242
          %245 = dma.hbm_to_vmem [thread:$0]  %s241, 64, %s243, %s230
        $region28: #{tpu_custom_call.1} parent=23 // pred_fallthru
          _
        // Predicated region
        $region29: #{tpu_custom_call.1} parent=23 // pred_check
          %p246 = pneg %p86
        $region30: #{tpu_custom_call.1} parent=23 // pred_check_branch
          %248 = sbr.rel (%p246) target = $region32
        $region31: #{tpu_custom_call.1} parent=23 // pred_region
          %s249 = sand.u32 %s24, 1
          %s250 = scalar_lea.sflag [#allocation6], %s249
          %s251 = sand.u32 %s76, 1
          %s252 = smul.addr %s251, 4
          %s253 = scalar_lea.vmem [#allocation5], %s252
          %255 = vsyncadd %s250, 0
          %s256 = sadd.s32 %s32, %s31
          %s257 = smul.addr %s256, 4
          %s258 = scalar_lea.hbm %s1, %s257
          %s260 = sshll.u32 %s258, 4
          %s261 = int_to_ptr.hbm [resolvable:$true] %s260
          %s262 = sshll.u32 %s253, 4
          %s263 = int_to_ptr.vmem [resolvable:$true] %s262
          %265 = dma.hbm_to_vmem [thread:$0]  %s261, 64, %s263, %s250
        $region32: #{tpu_custom_call.1} parent=23 // pred_fallthru
          _
      $region24: #{tpu_custom_call.1} parent=5 // pred_fallthru
        _
      %p266 = scmp.le.s32.totalorder 1, %s24
      %p267 = scmp.lt.s32.totalorder %s24, 3
      %p268 = pnand %p266, %p267
      %p269 = pneg %p268
      // Predicated region
      $region33: #{tpu_custom_call.1} parent=5 // pred_check
        _
      $region34: #{tpu_custom_call.1} parent=5 // pred_check_branch
        %271 = sbr.rel (%p268) target = $region36
      $region35: #{tpu_custom_call.1} parent=5 // pred_region
        %s272 = ssub.s32 %s24, 1
        %s273 = sand.u32 %s51, 1
        %s274 = scalar_lea.sflag [#allocation3], %s273
        %s275 = sand.u32 %s51, 1
        %s276 = smul.addr %s275, 4
        %s277 = scalar_lea.vmem [#allocation2], %s276
        // Predicated region
        $region37: #{tpu_custom_call.1} parent=35 // pred_check
          %p278 = pneg %p64
        $region38: #{tpu_custom_call.1} parent=35 // pred_check_branch
          %280 = sbr.rel (%p278) target = $region40
        $region39: #{tpu_custom_call.1} parent=35 // pred_region
          %282 = dma.done %s274, 64
        $region40: #{tpu_custom_call.1} parent=35 // pred_fallthru
          _
        %s283 = sand.u32 %s29, 1
        %s284 = scalar_lea.sflag [#allocation6], %s283
        %s285 = sand.u32 %s79, 1
        %s286 = smul.addr %s285, 4
        %s287 = scalar_lea.vmem [#allocation5], %s286
        // Predicated region
        $region41: #{tpu_custom_call.1} parent=35 // pred_check
          %p288 = pneg %p92
        $region42: #{tpu_custom_call.1} parent=35 // pred_check_branch
          %290 = sbr.rel (%p288) target = $region44
        $region43: #{tpu_custom_call.1} parent=35 // pred_region
          %292 = dma.done %s284, 64
        $region44: #{tpu_custom_call.1} parent=35 // pred_fallthru
          _
        // Predicated region
        $region45: #{tpu_custom_call.1} parent=35 // pred_check
          %p293 = pneg %p113
        $region46: #{tpu_custom_call.1} parent=35 // pred_check_branch
          %295 = sbr.rel (%p293) target = $region48
        $region47: #{tpu_custom_call.1} parent=35 // pred_region
          %297 = dma.done [#allocation6], 512
        $region48: #{tpu_custom_call.1} parent=35 // pred_fallthru
          _
        %s298 = sand.u32 %s51, 1
        %s299 = scalar_lea.sflag [#allocation3], %s298
        %s300 = sand.u32 %s51, 1
        %s301 = smul.addr %s300, 4
        %s302 = scalar_lea.vmem [#allocation2], %s301
        %p303 = pneg %p64
        %p304 = pneg %p61
        %s305 = sand.u32 %s29, 1
        %s306 = scalar_lea.sflag [#allocation6], %s305
        %s307 = sand.u32 %s79, 1
        %s308 = smul.addr %s307, 4
        %s309 = scalar_lea.vmem [#allocation5], %s308
        %p310 = pneg %p92
        %p311 = pneg %p89
        %p312 = pneg %p113
        %p313 = pneg %p110
        %p314 = pneg %p134
        %p315 = pneg %p131
        %p316 = pneg %p162
        %p317 = pneg %p159
        %s318 = sand.u32 %s149, 1
        %s319 = scalar_lea.sflag [#allocation4], %s318
        %s320 = sand.u32 %s149, 1
        %s321 = smul.addr %s320, 16
        %s322 = scalar_lea.vmem [#allocation8], %s321
        %p323 = pneg %p190
        %p324 = pneg %p187
        %s325 = sand.u32 %s177, 1
        %s326 = scalar_lea.sflag [#allocation10], %s325
        %s327 = sand.u32 %s177, 1
        %s328 = smul.addr %s327, 16
        %s329 = scalar_lea.vmem [#allocation9], %s328
        %v331 = vld [vmem:[%s3] sm:$0x3]
        %v332 = vld [vmem:[%s277] sm:$0xf]
        %v333 = vld [vmem:[#allocation7] sm:$0xf]
        %v334 = vld [vmem:[#allocation7 + $0x4] sm:$0xf]
        %v335 = vld [vmem:[#allocation7 + $0x8] sm:$0xf]
        %v336 = vld [vmem:[#allocation7 + $0xc] sm:$0xf]
        %v337 = vperm.slane %v331, 0
        %v342 = vunpack.c.l.b16 %v333
        %v343 = vunpack.c.l.b16 %v334
        %v344 = vunpack.c.l.b16 %v335
        %v345 = vunpack.c.l.b16 %v336
        %v346 = vpack.c.b16 %v343, %v342
        %v347 = vpack.c.b16 %v345, %v344
        %vm350 = vcmask 261120
        %v352 = vsel %vm350, %v332, 0
        %354 = vmatpush.bf16.msra.mxu0 0
        %355 = vmatpush.bf16.msra.mxu0 0
        %356 = vmatpush.bf16.msra.mxu0 0
        %357 = vmatpush.bf16.msra.mxu0 0
        %358 = vmatpush.bf16.msra.mxu0 0
        %359 = vmatpush.bf16.msra.mxu0 0
        %360 = vmatpush.bf16.msra.mxu0 %v347
        %361 = vmatpush.bf16.msra.mxu0 %v346
        %362 = vmatmul.bf16.gmra.mxu0 %v352
        %v363 = vpop.f32.mrf.mxu0
        %v364 = vadd.f32 %v337, %v363
        %v365 = vpop.f32.mrf.mxu0
        %366 = vdwg.mxu0
        %368 = vrot.lane.b32.xlu0 %v364, 120
        %v369 = vpop.permute.xlu0 %368
        %371 = vrot.lane.b32.xlu0 %v364, 112
        %v372 = vpop.permute.xlu0 %371
        %374 = vrot.lane.b32.xlu0 %v364, 104
        %v375 = vpop.permute.xlu0 %374
        %v377 = vrot.slane %v372, 4
        %vm378 = vcmask 1047556
        %v379 = vsel %vm378, %v377, %v364
        %v380 = vrot.slane %v364, 4
        %v381 = vsel %vm378, %v372, %v380
        %v383 = vunpack.c.l.s4 1983009808
        %v384 = vunpack.c.0.s8 %v383
        %v385 = vperm.slane %v379, %v384
        %v387 = vunpack.c.l.s4 1983009808
        %v388 = vunpack.c.0.s8 %v387
        %v389 = vperm.slane %v381, %v388
        %v390 = vrot.slane %v375, 4
        %v391 = vsel %vm378, %v390, %v369
        %v392 = vrot.slane %v369, 4
        %v393 = vsel %vm378, %v375, %v392
        %v395 = vunpack.c.l.s4 1983009808
        %v396 = vunpack.c.0.s8 %v395
        %v397 = vperm.slane %v391, %v396
        %v399 = vunpack.c.l.s4 1983009808
        %v400 = vunpack.c.0.s8 %v399
        %v401 = vperm.slane %v393, %v400
        %v402 = vrot.slane %v397, 4
        %v403 = vsel %vm378, %v402, %v385
        %v404 = vrot.slane %v385, 4
        %v405 = vsel %vm378, %v397, %v404
        %v407 = vunpack.c.l.s4 1934713408
        %v408 = vunpack.c.0.s8 %v407
        %v409 = vperm.slane %v403, %v408
        %v411 = vunpack.c.l.s4 1934713408
        %v412 = vunpack.c.0.s8 %v411
        %v413 = vperm.slane %v405, %v412
        %v414 = vrot.slane %v401, 4
        %v415 = vsel %vm378, %v414, %v389
        %v416 = vrot.slane %v389, 4
        %v417 = vsel %vm378, %v401, %v416
        %v419 = vunpack.c.l.s4 1934713408
        %v420 = vunpack.c.0.s8 %v419
        %v421 = vperm.slane %v415, %v420
        %v423 = vunpack.c.l.s4 1934713408
        %v424 = vunpack.c.0.s8 %v423
        %v425 = vperm.slane %v417, %v424
        %v426 = vrot.slane %v409, 4
        %v427 = vsel %vm378, 0.0, %v426
        %v428 = vrot.slane %v413, 4
        %v429 = vsel %vm378, 0.0, %v428
        %v430 = vrot.slane %v421, 4
        %v431 = vsel %vm378, 0.0, %v430
        %v432 = vrot.slane %v425, 4
        %v433 = vsel %vm378, 0.0, %v432
        %v434 = vsel %vm378, %v428, %v409
        %v436 = vunpack.c.l.s4 1983009808
        %v437 = vunpack.c.0.s8 %v436
        %v438 = vperm.slane %v434, %v437
        %v439 = vrot.slane %v429, 4
        %v440 = vsel %vm378, %v439, %v427
        %v442 = vunpack.c.l.s4 1983009808
        %v443 = vunpack.c.0.s8 %v442
        %v444 = vperm.slane %v440, %v443
        %v445 = vsel %vm378, %v432, %v421
        %v447 = vunpack.c.l.s4 1983009808
        %v448 = vunpack.c.0.s8 %v447
        %v449 = vperm.slane %v445, %v448
        %v450 = vrot.slane %v433, 4
        %v451 = vsel %vm378, %v450, %v431
        %v453 = vunpack.c.l.s4 1983009808
        %v454 = vunpack.c.0.s8 %v453
        %v455 = vperm.slane %v451, %v454
        %v456 = vrot.slane %v444, 4
        %v457 = vsel %vm378, %v456, %v438
        %v458 = vrot.slane %v438, 4
        %v459 = vsel %vm378, %v444, %v458
        %v461 = vunpack.c.l.s4 1934713408
        %v462 = vunpack.c.0.s8 %v461
        %v463 = vperm.slane %v457, %v462
        %v465 = vunpack.c.l.s4 1934713408
        %v466 = vunpack.c.0.s8 %v465
        %v467 = vperm.slane %v459, %v466
        %v468 = vrot.slane %v455, 4
        %v469 = vsel %vm378, %v468, %v449
        %v470 = vrot.slane %v449, 4
        %v471 = vsel %vm378, %v455, %v470
        %v473 = vunpack.c.l.s4 1934713408
        %v474 = vunpack.c.0.s8 %v473
        %v475 = vperm.slane %v469, %v474
        %v477 = vunpack.c.l.s4 1934713408
        %v478 = vunpack.c.0.s8 %v477
        %v479 = vperm.slane %v471, %v478
        %v480 = vrot.slane %v475, 4
        %v481 = vsel %vm378, %v480, %v463
        %v482 = vrot.slane %v463, 4
        %v483 = vsel %vm378, %v475, %v482
        %v484 = vrot.slane %v479, 4
        %v485 = vsel %vm378, %v484, %v467
        %v486 = vrot.slane %v467, 4
        %v487 = vsel %vm378, %v479, %v486
        %v488 = vpack.c.bf16 %v481, %v481
        %v489 = vpack.c.bf16 %v483, %v483
        %v490 = vpack.c.bf16 %v485, %v485
        %v491 = vpack.c.bf16 %v487, %v487
        %vm492 = vcmask 60416
        %493 = vst.msk [vmem:[%s322] sm:$0xf] %vm492, %v488
        %494 = vst.msk [vmem:[%s322 + $0x4] sm:$0xf] %vm492, %v489
        %495 = vst.msk [vmem:[%s322 + $0x8] sm:$0xf] %vm492, %v490
        %496 = vst.msk [vmem:[%s322 + $0xc] sm:$0xf] %vm492, %v491
        %v497 = vld [vmem:[%s287] sm:$0xf]
        %s498 = scalar_lea.vmem [#allocation7], 16
        %v499 = vld [vmem:[%s498] sm:$0xf]
        %v500 = vld [vmem:[%s498 + $0x4] sm:$0xf]
        %v501 = vld [vmem:[%s498 + $0x8] sm:$0xf]
        %v502 = vld [vmem:[%s498 + $0xc] sm:$0xf]
        %v503 = vperm.slane %v331, 1
        %v508 = vunpack.c.l.b16 %v499
        %v509 = vunpack.c.l.b16 %v500
        %v510 = vunpack.c.l.b16 %v501
        %v511 = vunpack.c.l.b16 %v502
        %v512 = vpack.c.b16 %v509, %v508
        %v513 = vpack.c.b16 %v511, %v510
        %v517 = vsel %vm350, %v497, 0
        %519 = vmatpush.bf16.msra.mxu0 0
        %520 = vmatpush.bf16.msra.mxu0 0
        %521 = vmatpush.bf16.msra.mxu0 0
        %522 = vmatpush.bf16.msra.mxu0 0
        %523 = vmatpush.bf16.msra.mxu0 0
        %524 = vmatpush.bf16.msra.mxu0 0
        %525 = vmatpush.bf16.msra.mxu0 %v513
        %526 = vmatpush.bf16.msra.mxu0 %v512
        %527 = vmatmul.bf16.gmra.mxu0 %v517
        %v528 = vpop.f32.mrf.mxu0
        %v529 = vadd.f32 %v503, %v528
        %v530 = vpop.f32.mrf.mxu0
        %531 = vdwg.mxu0
        %533 = vrot.lane.b32.xlu0 %v529, 120
        %v534 = vpop.permute.xlu0 %533
        %536 = vrot.lane.b32.xlu0 %v529, 112
        %v537 = vpop.permute.xlu0 %536
        %539 = vrot.lane.b32.xlu0 %v529, 104
        %v540 = vpop.permute.xlu0 %539
        %v542 = vrot.slane %v537, 4
        %v543 = vsel %vm378, %v542, %v529
        %v544 = vrot.slane %v529, 4
        %v545 = vsel %vm378, %v537, %v544
        %v547 = vunpack.c.l.s4 1983009808
        %v548 = vunpack.c.0.s8 %v547
        %v549 = vperm.slane %v543, %v548
        %v551 = vunpack.c.l.s4 1983009808
        %v552 = vunpack.c.0.s8 %v551
        %v553 = vperm.slane %v545, %v552
        %v554 = vrot.slane %v540, 4
        %v555 = vsel %vm378, %v554, %v534
        %v556 = vrot.slane %v534, 4
        %v557 = vsel %vm378, %v540, %v556
        %v559 = vunpack.c.l.s4 1983009808
        %v560 = vunpack.c.0.s8 %v559
        %v561 = vperm.slane %v555, %v560
        %v563 = vunpack.c.l.s4 1983009808
        %v564 = vunpack.c.0.s8 %v563
        %v565 = vperm.slane %v557, %v564
        %v566 = vrot.slane %v561, 4
        %v567 = vsel %vm378, %v566, %v549
        %v568 = vrot.slane %v549, 4
        %v569 = vsel %vm378, %v561, %v568
        %v571 = vunpack.c.l.s4 1934713408
        %v572 = vunpack.c.0.s8 %v571
        %v573 = vperm.slane %v567, %v572
        %v575 = vunpack.c.l.s4 1934713408
        %v576 = vunpack.c.0.s8 %v575
        %v577 = vperm.slane %v569, %v576
        %v578 = vrot.slane %v565, 4
        %v579 = vsel %vm378, %v578, %v553
        %v580 = vrot.slane %v553, 4
        %v581 = vsel %vm378, %v565, %v580
        %v583 = vunpack.c.l.s4 1934713408
        %v584 = vunpack.c.0.s8 %v583
        %v585 = vperm.slane %v579, %v584
        %v587 = vunpack.c.l.s4 1934713408
        %v588 = vunpack.c.0.s8 %v587
        %v589 = vperm.slane %v581, %v588
        %v590 = vrot.slane %v573, 4
        %v591 = vsel %vm378, 0.0, %v590
        %v592 = vrot.slane %v577, 4
        %v593 = vsel %vm378, 0.0, %v592
        %v594 = vrot.slane %v585, 4
        %v595 = vsel %vm378, 0.0, %v594
        %v596 = vrot.slane %v589, 4
        %v597 = vsel %vm378, 0.0, %v596
        %v598 = vsel %vm378, %v592, %v573
        %v600 = vunpack.c.l.s4 1983009808
        %v601 = vunpack.c.0.s8 %v600
        %v602 = vperm.slane %v598, %v601
        %v603 = vrot.slane %v593, 4
        %v604 = vsel %vm378, %v603, %v591
        %v606 = vunpack.c.l.s4 1983009808
        %v607 = vunpack.c.0.s8 %v606
        %v608 = vperm.slane %v604, %v607
        %v609 = vsel %vm378, %v596, %v585
        %v611 = vunpack.c.l.s4 1983009808
        %v612 = vunpack.c.0.s8 %v611
        %v613 = vperm.slane %v609, %v612
        %v614 = vrot.slane %v597, 4
        %v615 = vsel %vm378, %v614, %v595
        %v617 = vunpack.c.l.s4 1983009808
        %v618 = vunpack.c.0.s8 %v617
        %v619 = vperm.slane %v615, %v618
        %v620 = vrot.slane %v608, 4
        %v621 = vsel %vm378, %v620, %v602
        %v622 = vrot.slane %v602, 4
        %v623 = vsel %vm378, %v608, %v622
        %v625 = vunpack.c.l.s4 1934713408
        %v626 = vunpack.c.0.s8 %v625
        %v627 = vperm.slane %v621, %v626
        %v629 = vunpack.c.l.s4 1934713408
        %v630 = vunpack.c.0.s8 %v629
        %v631 = vperm.slane %v623, %v630
        %v632 = vrot.slane %v619, 4
        %v633 = vsel %vm378, %v632, %v613
        %v634 = vrot.slane %v613, 4
        %v635 = vsel %vm378, %v619, %v634
        %v637 = vunpack.c.l.s4 1934713408
        %v638 = vunpack.c.0.s8 %v637
        %v639 = vperm.slane %v633, %v638
        %v641 = vunpack.c.l.s4 1934713408
        %v642 = vunpack.c.0.s8 %v641
        %v643 = vperm.slane %v635, %v642
        %v644 = vrot.slane %v639, 4
        %v645 = vsel %vm378, %v644, %v627
        %v646 = vrot.slane %v627, 4
        %v647 = vsel %vm378, %v639, %v646
        %v648 = vrot.slane %v643, 4
        %v649 = vsel %vm378, %v648, %v631
        %v650 = vrot.slane %v631, 4
        %v651 = vsel %vm378, %v643, %v650
        %v652 = vpack.c.bf16 %v645, %v645
        %v653 = vpack.c.bf16 %v647, %v647
        %v654 = vpack.c.bf16 %v649, %v649
        %v655 = vpack.c.bf16 %v651, %v651
        %656 = vst.msk [vmem:[%s329] sm:$0xf] %vm492, %v652
        %657 = vst.msk [vmem:[%s329 + $0x4] sm:$0xf] %vm492, %v653
        %658 = vst.msk [vmem:[%s329 + $0x8] sm:$0xf] %vm492, %v654
        %659 = vst.msk [vmem:[%s329 + $0xc] sm:$0xf] %vm492, %v655
        %s660 = sand.u32 %s149, 1
        %s661 = scalar_lea.sflag [#allocation4], %s660
        %s662 = sand.u32 %s149, 1
        %s663 = smul.addr %s662, 16
        %s664 = scalar_lea.vmem [#allocation8], %s663
        %s665 = sand.u32 %s177, 1
        %s666 = scalar_lea.sflag [#allocation10], %s665
        %s667 = sand.u32 %s177, 1
        %s668 = smul.addr %s667, 16
        %s669 = scalar_lea.vmem [#allocation9], %s668
        // Predicated region
        $region49: #{tpu_custom_call.1} parent=35 // pred_check
          %p670 = pneg %p159
        $region50: #{tpu_custom_call.1} parent=35 // pred_check_branch
          %672 = sbr.rel (%p670) target = $region52
        $region51: #{tpu_custom_call.1} parent=35 // pred_region
          %674 = vsyncadd %s661, 0
          %s675 = smul.addr %s33, 4
          %s676 = sadd.s32 %s34, %s675
          %s677 = smul.addr %s676, 4
          %s678 = scalar_lea.hbm %s4, %s677
          %s679 = sshll.u32 %s664, 4
          %s680 = int_to_ptr.vmem [resolvable:$true] %s679
          %s681 = sshll.u32 %s678, 4
          %s682 = int_to_ptr.hbm [resolvable:$true] %s681
          %687 = dma.vmem_to_hbm [thread:$0]  %s680, 256, %s682, %s661, 64, 64, 4
        $region52: #{tpu_custom_call.1} parent=35 // pred_fallthru
          _
        // Predicated region
        $region53: #{tpu_custom_call.1} parent=35 // pred_check
          %p688 = pneg %p187
        $region54: #{tpu_custom_call.1} parent=35 // pred_check_branch
          %690 = sbr.rel (%p688) target = $region56
        $region55: #{tpu_custom_call.1} parent=35 // pred_region
          %692 = vsyncadd %s666, 0
          %s693 = smul.addr %s33, 4
          %s694 = sadd.s32 %s34, %s693
          %s695 = smul.addr %s694, 4
          %s696 = scalar_lea.hbm %s5, %s695
          %s697 = sshll.u32 %s669, 4
          %s698 = int_to_ptr.vmem [resolvable:$true] %s697
          %s699 = sshll.u32 %s696, 4
          %s700 = int_to_ptr.hbm [resolvable:$true] %s699
          %705 = dma.vmem_to_hbm [thread:$0]  %s698, 256, %s700, %s666, 64, 64, 4
        $region56: #{tpu_custom_call.1} parent=35 // pred_fallthru
          _
      $region36: #{tpu_custom_call.1} parent=5 // pred_fallthru
        _
      %p706 = scmp.le.s32.totalorder 2, %s24
      // Predicated region
      $region57: #{tpu_custom_call.1} parent=5 // pred_check
        %p707 = pneg %p706
      $region58: #{tpu_custom_call.1} parent=5 // pred_check_branch
        %709 = sbr.rel (%p707) target = $region60
      $region59: #{tpu_custom_call.1} parent=5 // pred_region
        %s710 = ssub.s32 %s24, 2
        // Predicated region
        $region61: #{tpu_custom_call.1} parent=59 // pred_check
          %p711 = pneg %p165
        $region62: #{tpu_custom_call.1} parent=59 // pred_check_branch
          %713 = sbr.rel (%p711) target = $region64
        $region63: #{tpu_custom_call.1} parent=59 // pred_region
          %s714 = sand.u32 %s150, 1
          %s715 = scalar_lea.sflag [#allocation4], %s714
          %s716 = sand.u32 %s150, 1
          %s717 = smul.addr %s716, 16
          %s718 = scalar_lea.vmem [#allocation8], %s717
          %720 = dma.done %s715, 256
        $region64: #{tpu_custom_call.1} parent=59 // pred_fallthru
          _
        // Predicated region
        $region65: #{tpu_custom_call.1} parent=59 // pred_check
          %p721 = pneg %p193
        $region66: #{tpu_custom_call.1} parent=59 // pred_check_branch
          %723 = sbr.rel (%p721) target = $region68
        $region67: #{tpu_custom_call.1} parent=59 // pred_region
          %s724 = sand.u32 %s178, 1
          %s725 = scalar_lea.sflag [#allocation10], %s724
          %s726 = sand.u32 %s178, 1
          %s727 = smul.addr %s726, 16
          %s728 = scalar_lea.vmem [#allocation9], %s727
          %730 = dma.done %s725, 256
        $region68: #{tpu_custom_call.1} parent=59 // pred_fallthru
          _
      $region60: #{tpu_custom_call.1} parent=5 // pred_fallthru
        _
    $region6: #{tpu_custom_call.1} parent=1 // loop_footer
      %s28 = sadd.s32 1, %s24
    $region7: #{tpu_custom_call.1} parent=1 // loop_footer_branch
      %23 = sbr.rel target = $region3
    $region8: #{tpu_custom_call.1} parent=1 // loop_exit
      _
    %731 = vsyncpa [#allocation3], 1
    %s732 = scalar_lea.sflag [#allocation3], 1
    %733 = vsyncpa %s732, 1
    %734 = vsyncpa [#allocation6], 1
    %s735 = scalar_lea.sflag [#allocation6], 1
    %736 = vsyncpa %s735, 1
    %737 = vsyncpa [#allocation4], 1
    %s738 = scalar_lea.sflag [#allocation4], 1
    %739 = vsyncpa %s738, 1
    %740 = vsyncpa [#allocation10], 1
    %s741 = scalar_lea.sflag [#allocation10], 1
    %742 = vsyncpa %s741, 1

// kernel: tpu_custom_call.1
$region0: #{tpu_custom_call.1}
  #allocation0 [shape = 'u32[]', space=smem, size = 0x4, offset = 0x4, fixed_abs, tag = 'smem constant byte address 0x4 - core index']
  #allocation1 [shape = 'u32[72,128]{1,0:T(1,128)}', space=vmem, size = 0x9000, scoped, tag = 'internal scratch']
  %s0 = inlined_call_operand.hbm [shape: bf16[2,8,32], index: 0, kind: input, shape index: {}]
  %s1 = inlined_call_operand.hbm [shape: bf16[2,8,32], index: 1, kind: input, shape index: {}]
  %s2 = inlined_call_operand.hbm [shape: bf16[2,32,32], index: 2, kind: input, shape index: {}]
  %s3 = inlined_call_operand.vmem [shape: f32[2,32], index: 3, kind: input, shape index: {}]
  %s4 = inlined_call_operand.hbm [shape: bf16[2,4,8,8], index: 4, kind: output, shape index: {0}]
  %s5 = inlined_call_operand.hbm [shape: bf16[2,4,8,8], index: 5, kind: output, shape index: {1}]
  %6 = xla_tuple %s4, %s5
  %s7 = sld [smem:[#allocation0]]
  $region69: #{tpu_custom_call.1} parent=0
    _
  %s9 = ssub.s32 1, %s7
  %s10 = scalar_select 0, %s9, %s7
  $region1: #{tpu_custom_call.1} parent=0
    #allocation2 [shape = 'u8[4096]{0}', space=vmem, size = 0x1000, scoped, tag = 'input window, operand 0']
    #allocation3 [shape = 's32[2]{0}', space=sflag, size = 0x8, scoped, tag = 'scoped memory for tpu_custom_call.1']
    #allocation4 [shape = 's32[2]{0}', space=sflag, size = 0x8, scoped, tag = 'scoped memory for tpu_custom_call.1']
    #allocation5 [shape = 'u8[4096]{0}', space=vmem, size = 0x1000, scoped, tag = 'input window, operand 1']
    #allocation6 [shape = 's32[2]{0}', space=sflag, size = 0x8, scoped, tag = 'scoped memory for tpu_custom_call.1']
    #allocation7 [shape = 'u8[16384]{0}', space=vmem, size = 0x4000, scoped, tag = 'input window, operand 2, single buffered']
    #allocation8 [shape = 'u8[16384]{0}', space=vmem, size = 0x4000, scoped, tag = 'output window, operand 0']
    #allocation9 [shape = 'u8[16384]{0}', space=vmem, size = 0x4000, scoped, tag = 'output window, operand 1']
    #allocation10 [shape = 's32[2]{0}', space=sflag, size = 0x8, scoped, tag = 'scoped memory for tpu_custom_call.1']
    %11 = vsyncpa [#allocation3], 0
    %s12 = scalar_lea.sflag [#allocation3], 1
    %13 = vsyncpa %s12, 0
    %14 = vsyncpa [#allocation6], 0
    %s15 = scalar_lea.sflag [#allocation6], 1
    %16 = vsyncpa %s15, 0
    %17 = vsyncpa [#allocation4], 0
    %s18 = scalar_lea.sflag [#allocation4], 1
    %19 = vsyncpa %s18, 0
    %20 = vsyncpa [#allocation10], 0
    %s21 = scalar_lea.sflag [#allocation10], 1
    %22 = vsyncpa %s21, 0
    loop: start=0, step=1, limit=4
    $region2: #{tpu_custom_call.1} parent=1 // loop_pre_header
      _
    $region3: #{tpu_custom_call.1} parent=1 // loop_header
      %s24 = sphi 0, %s28
      %p25 = scmp.ge.s32.totalorder %s24, 4
      %s31 = sphi 0, %s43
      %s32 = sphi 0, %s39
      %s33 = sphi 0, %s31
      %s34 = sphi 0, %s32
      %s35 = sphi 0, %s33
      %s36 = sphi 0, %s34
      %s48 = sphi 0, %s50
      %s51 = sphi 0, %s48
      %s52 = sphi 0, %s51
      %s68 = sphi 0, %s52
      %s76 = sphi 0, %s78
      %s79 = sphi 0, %s76
      %s80 = sphi 0, %s79
      %s96 = sphi 0, %s80
      %s100 = sphi 0, %s100
      %s102 = sphi 0, %s100
      %s103 = sphi 0, %s102
      %s117 = sphi 0, %s103
      %s121 = sphi 0, %s121
      %s123 = sphi 0, %s121
      %s124 = sphi 0, %s123
      %s138 = sphi 0, %s124
      %s146 = sphi 0, %s148
      %s149 = sphi 0, %s146
      %s150 = sphi 0, %s149
      %s166 = sphi 0, %s150
      %s174 = sphi 0, %s176
      %s177 = sphi 0, %s174
      %s178 = sphi 0, %s177
      %s194 = sphi 0, %s178
    $region4: #{tpu_custom_call.1} parent=1 // loop_header_branch
      %27 = sbr.rel (%p25) target = $region8
    $region5: #{tpu_custom_call.1} parent=1 // loop_body
      %s29 = ssub.s32 %s24, 1
      %s30 = ssub.s32 %s24, 2
      %s37 = sadd.s32 1, %s32
      %p38 = scmp.ge.s32.totalorder %s37, 1
      %s39 = scalar_select %p38, 0, %s37
      %s40 = sadd.s32 1, %s31
      %s41 = scalar_select %p38, %s40, %s31
      %p42 = scmp.ge.s32.totalorder %s41, 2
      %s43 = scalar_select %p42, 0, %s41
      %s44 = ssub.s32 %s31, %s43
      %s45 = ssub.s32 %s32, %s39
      %s46 = sor.u32 %s44, %s45
      %p47 = scmp.eq.s32.totalorder %s46, 0
      %s49 = sadd.s32 %s48, 1
      %s50 = scalar_select %p47, %s48, %s49
      %p53 = pneg %p47
      %p54 = scmp.eq.s32.totalorder %s24, 1
      %p55 = por %p53, %p54
      %p56 = scmp.ne.s32.totalorder %s48, %s51
      %p57 = scmp.eq.s32.totalorder %s24, 0
      %p58 = por %p56, %p57
      %p59 = scmp.ne.s32.totalorder %s48, %s51
      %p60 = scmp.eq.s32.totalorder %s29, 1
      %p61 = por %p59, %p60
      %p62 = scmp.ne.s32.totalorder %s51, %s52
      %p63 = scmp.eq.s32.totalorder %s29, 0
      %p64 = por %p62, %p63
      %p65 = scmp.ne.s32.totalorder %s51, %s52
      %p66 = scmp.eq.s32.totalorder %s30, 1
      %p67 = por %p65, %p66
      %p69 = scmp.ne.s32.totalorder %s52, %s68
      %p70 = scmp.eq.s32.totalorder %s30, 0
      %p71 = por %p69, %p70
      %s72 = ssub.s32 %s31, %s43
      %s73 = ssub.s32 %s32, %s39
      %s74 = sor.u32 %s72, %s73
      %p75 = scmp.eq.s32.totalorder %s74, 0
      %s77 = sadd.s32 %s76, 1
      %s78 = scalar_select %p75, %s76, %s77
      %p81 = pneg %p75
      %p82 = scmp.eq.s32.totalorder %s24, 1
      %p83 = por %p81, %p82
      %p84 = scmp.ne.s32.totalorder %s76, %s79
      %p85 = scmp.eq.s32.totalorder %s24, 0
      %p86 = por %p84, %p85
      %p87 = scmp.ne.s32.totalorder %s76, %s79
      %p88 = scmp.eq.s32.totalorder %s29, 1
      %p89 = por %p87, %p88
      %p90 = scmp.ne.s32.totalorder %s79, %s80
      %p91 = scmp.eq.s32.totalorder %s29, 0
      %p92 = por %p90, %p91
      %p93 = scmp.ne.s32.totalorder %s79, %s80
      %p94 = scmp.eq.s32.totalorder %s30, 1
      %p95 = por %p93, %p94
      %p97 = scmp.ne.s32.totalorder %s80, %s96
      %p98 = scmp.eq.s32.totalorder %s30, 0
      %p99 = por %p97, %p98
      %s101 = sadd.s32 %s100, 1
      %p104 = scmp.eq.s32.totalorder %s24, 1
      %p105 = scmp.ne.s32.totalorder %s100, %s102
      %p106 = scmp.eq.s32.totalorder %s24, 0
      %p107 = por %p105, %p106
      %p108 = scmp.ne.s32.totalorder %s100, %s102
      %p109 = scmp.eq.s32.totalorder %s29, 1
      %p110 = por %p108, %p109
      %p111 = scmp.ne.s32.totalorder %s102, %s103
      %p112 = scmp.eq.s32.totalorder %s29, 0
      %p113 = por %p111, %p112
      %p114 = scmp.ne.s32.totalorder %s102, %s103
      %p115 = scmp.eq.s32.totalorder %s30, 1
      %p116 = por %p114, %p115
      %p118 = scmp.ne.s32.totalorder %s103, %s117
      %p119 = scmp.eq.s32.totalorder %s30, 0
      %p120 = por %p118, %p119
      %s122 = sadd.s32 %s121, 1
      %p125 = scmp.eq.s32.totalorder %s24, 1
      %p126 = scmp.ne.s32.totalorder %s121, %s123
      %p127 = scmp.eq.s32.totalorder %s24, 0
      %p128 = por %p126, %p127
      %p129 = scmp.ne.s32.totalorder %s121, %s123
      %p130 = scmp.eq.s32.totalorder %s29, 1
      %p131 = por %p129, %p130
      %p132 = scmp.ne.s32.totalorder %s123, %s124
      %p133 = scmp.eq.s32.totalorder %s29, 0
      %p134 = por %p132, %p133
      %p135 = scmp.ne.s32.totalorder %s123, %s124
      %p136 = scmp.eq.s32.totalorder %s30, 1
      %p137 = por %p135, %p136
      %p139 = scmp.ne.s32.totalorder %s124, %s138
      %p140 = scmp.eq.s32.totalorder %s30, 0
      %p141 = por %p139, %p140
      %s142 = ssub.s32 %s31, %s43
      %s143 = ssub.s32 %s32, %s39
      %s144 = sor.u32 %s142, %s143
      %p145 = scmp.eq.s32.totalorder %s144, 0
      %s147 = sadd.s32 %s146, 1
      %s148 = scalar_select %p145, %s146, %s147
      %p151 = pneg %p145
      %p152 = scmp.eq.s32.totalorder %s24, 1
      %p153 = por %p151, %p152
      %p154 = scmp.ne.s32.totalorder %s146, %s149
      %p155 = scmp.eq.s32.totalorder %s24, 0
      %p156 = por %p154, %p155
      %p157 = scmp.ne.s32.totalorder %s146, %s149
      %p158 = scmp.eq.s32.totalorder %s29, 1
      %p159 = por %p157, %p158
      %p160 = scmp.ne.s32.totalorder %s149, %s150
      %p161 = scmp.eq.s32.totalorder %s29, 0
      %p162 = por %p160, %p161
      %p163 = scmp.ne.s32.totalorder %s149, %s150
      %p164 = scmp.eq.s32.totalorder %s30, 1
      %p165 = por %p163, %p164
      %p167 = scmp.ne.s32.totalorder %s150, %s166
      %p168 = scmp.eq.s32.totalorder %s30, 0
      %p169 = por %p167, %p168
      %s170 = ssub.s32 %s31, %s43
      %s171 = ssub.s32 %s32, %s39
      %s172 = sor.u32 %s170, %s171
      %p173 = scmp.eq.s32.totalorder %s172, 0
      %s175 = sadd.s32 %s174, 1
      %s176 = scalar_select %p173, %s174, %s175
      %p179 = pneg %p173
      %p180 = scmp.eq.s32.totalorder %s24, 1
      %p181 = por %p179, %p180
      %p182 = scmp.ne.s32.totalorder %s174, %s177
      %p183 = scmp.eq.s32.totalorder %s24, 0
      %p184 = por %p182, %p183
      %p185 = scmp.ne.s32.totalorder %s174, %s177
      %p186 = scmp.eq.s32.totalorder %s29, 1
      %p187 = por %p185, %p186
      %p188 = scmp.ne.s32.totalorder %s177, %s178
      %p189 = scmp.eq.s32.totalorder %s29, 0
      %p190 = por %p188, %p189
      %p191 = scmp.ne.s32.totalorder %s177, %s178
      %p192 = scmp.eq.s32.totalorder %s30, 1
      %p193 = por %p191, %p192
      %p195 = scmp.ne.s32.totalorder %s178, %s194
      %p196 = scmp.eq.s32.totalorder %s30, 0
      %p197 = por %p195, %p196
      %p198 = scmp.le.s32.totalorder 1, %s24
      %p199 = scmp.lt.s32.totalorder %s24, 3
      %p200 = pnand %p198, %p199
      %p201 = pneg %p200
      // Predicated region
      $region9: #{tpu_custom_call.1} parent=5 // pred_check
        _
      $region10: #{tpu_custom_call.1} parent=5 // pred_check_branch
        %203 = sbr.rel (%p200) target = $region12
      $region11: #{tpu_custom_call.1} parent=5 // pred_region
        %s204 = ssub.s32 %s24, 1
        // Predicated region
        $region13: #{tpu_custom_call.1} parent=11 // pred_check
          %p205 = pneg %p113
        $region14: #{tpu_custom_call.1} parent=11 // pred_check_branch
          %207 = sbr.rel (%p205) target = $region16
        $region15: #{tpu_custom_call.1} parent=11 // pred_region
          %209 = vsyncadd [#allocation6], 0
          %s210 = sshll.u32 %s2, 4
          %s211 = int_to_ptr.hbm [resolvable:$true] %s210
          %s212 = sshll.u32 [#allocation7], 4
          %s213 = int_to_ptr.vmem [resolvable:$true] %s212
          %218 = dma.hbm_to_vmem [thread:$0]  %s211, 512, %s213, [#allocation6], 64, 64, 4
        $region16: #{tpu_custom_call.1} parent=11 // pred_fallthru
          _
        // Predicated region
        $region17: #{tpu_custom_call.1} parent=11 // pred_check
          %p219 = pneg %p134
        $region18: #{tpu_custom_call.1} parent=11 // pred_check_branch
          %221 = sbr.rel (%p219) target = $region20
        $region19: #{tpu_custom_call.1} parent=11 // pred_region
          _
        $region20: #{tpu_custom_call.1} parent=11 // pred_fallthru
          _
      $region12: #{tpu_custom_call.1} parent=5 // pred_fallthru
        _
      %p222 = scmp.lt.s32.totalorder %s24, 2
      // Predicated region
      $region21: #{tpu_custom_call.1} parent=5 // pred_check
        %p223 = pneg %p222
      $region22: #{tpu_custom_call.1} parent=5 // pred_check_branch
        %225 = sbr.rel (%p223) target = $region24
      $region23: #{tpu_custom_call.1} parent=5 // pred_region
        // Predicated region
        $region25: #{tpu_custom_call.1} parent=23 // pred_check
          %p226 = pneg %p58
        $region26: #{tpu_custom_call.1} parent=23 // pred_check_branch
          %228 = sbr.rel (%p226) target = $region28
        $region27: #{tpu_custom_call.1} parent=23 // pred_region
          %s229 = sand.u32 %s48, 1
          %s230 = scalar_lea.sflag [#allocation3], %s229
          %s231 = sand.u32 %s48, 1
          %s232 = smul.addr %s231, 4
          %s233 = scalar_lea.vmem [#allocation2], %s232
          %235 = vsyncadd %s230, 0
          %s236 = sadd.s32 %s32, %s31
          %s237 = smul.addr %s236, 4
          %s238 = scalar_lea.hbm %s0, %s237
          %s240 = sshll.u32 %s238, 4
          %s241 = int_to_ptr.hbm [resolvable:$true] %s240
          %s242 = sshll.u32 %s233, 4
          %s243 = int_to_ptr.vmem [resolvable:$true] %s242
          %245 = dma.hbm_to_vmem [thread:$0]  %s241, 64, %s243, %s230
        $region28: #{tpu_custom_call.1} parent=23 // pred_fallthru
          _
        // Predicated region
        $region29: #{tpu_custom_call.1} parent=23 // pred_check
          %p246 = pneg %p86
        $region30: #{tpu_custom_call.1} parent=23 // pred_check_branch
          %248 = sbr.rel (%p246) target = $region32
        $region31: #{tpu_custom_call.1} parent=23 // pred_region
          %s249 = sand.u32 %s24, 1
          %s250 = scalar_lea.sflag [#allocation6], %s249
          %s251 = sand.u32 %s76, 1
          %s252 = smul.addr %s251, 4
          %s253 = scalar_lea.vmem [#allocation5], %s252
          %255 = vsyncadd %s250, 0
          %s256 = sadd.s32 %s32, %s31
          %s257 = smul.addr %s256, 4
          %s258 = scalar_lea.hbm %s1, %s257
          %s260 = sshll.u32 %s258, 4
          %s261 = int_to_ptr.hbm [resolvable:$true] %s260
          %s262 = sshll.u32 %s253, 4
          %s263 = int_to_ptr.vmem [resolvable:$true] %s262
          %265 = dma.hbm_to_vmem [thread:$0]  %s261, 64, %s263, %s250
        $region32: #{tpu_custom_call.1} parent=23 // pred_fallthru
          _
      $region24: #{tpu_custom_call.1} parent=5 // pred_fallthru
        _
      %p266 = scmp.le.s32.totalorder 1, %s24
      %p267 = scmp.lt.s32.totalorder %s24, 3
      %p268 = pnand %p266, %p267
      %p269 = pneg %p268
      // Predicated region
      $region33: #{tpu_custom_call.1} parent=5 // pred_check
        _
      $region34: #{tpu_custom_call.1} parent=5 // pred_check_branch
        %271 = sbr.rel (%p268) target = $region36
      $region35: #{tpu_custom_call.1} parent=5 // pred_region
        %s272 = ssub.s32 %s24, 1
        %s273 = sand.u32 %s51, 1
        %s274 = scalar_lea.sflag [#allocation3], %s273
        %s275 = sand.u32 %s51, 1
        %s276 = smul.addr %s275, 4
        %s277 = scalar_lea.vmem [#allocation2], %s276
        // Predicated region
        $region37: #{tpu_custom_call.1} parent=35 // pred_check
          %p278 = pneg %p64
        $region38: #{tpu_custom_call.1} parent=35 // pred_check_branch
          %280 = sbr.rel (%p278) target = $region40
        $region39: #{tpu_custom_call.1} parent=35 // pred_region
          %282 = dma.done %s274, 64
        $region40: #{tpu_custom_call.1} parent=35 // pred_fallthru
          _
        %s283 = sand.u32 %s29, 1
        %s284 = scalar_lea.sflag [#allocation6], %s283
        %s285 = sand.u32 %s79, 1
        %s286 = smul.addr %s285, 4
        %s287 = scalar_lea.vmem [#allocation5], %s286
        // Predicated region
        $region41: #{tpu_custom_call.1} parent=35 // pred_check
          %p288 = pneg %p92
        $region42: #{tpu_custom_call.1} parent=35 // pred_check_branch
          %290 = sbr.rel (%p288) target = $region44
        $region43: #{tpu_custom_call.1} parent=35 // pred_region
          %292 = dma.done %s284, 64
        $region44: #{tpu_custom_call.1} parent=35 // pred_fallthru
          _
        // Predicated region
        $region45: #{tpu_custom_call.1} parent=35 // pred_check
          %p293 = pneg %p113
        $region46: #{tpu_custom_call.1} parent=35 // pred_check_branch
          %295 = sbr.rel (%p293) target = $region48
        $region47: #{tpu_custom_call.1} parent=35 // pred_region
          %297 = dma.done [#allocation6], 512
        $region48: #{tpu_custom_call.1} parent=35 // pred_fallthru
          _
        %s298 = sand.u32 %s51, 1
        %s299 = scalar_lea.sflag [#allocation3], %s298
        %s300 = sand.u32 %s51, 1
        %s301 = smul.addr %s300, 4
        %s302 = scalar_lea.vmem [#allocation2], %s301
        %p303 = pneg %p64
        %p304 = pneg %p61
        %s305 = sand.u32 %s29, 1
        %s306 = scalar_lea.sflag [#allocation6], %s305
        %s307 = sand.u32 %s79, 1
        %s308 = smul.addr %s307, 4
        %s309 = scalar_lea.vmem [#allocation5], %s308
        %p310 = pneg %p92
        %p311 = pneg %p89
        %p312 = pneg %p113
        %p313 = pneg %p110
        %p314 = pneg %p134
        %p315 = pneg %p131
        %p316 = pneg %p162
        %p317 = pneg %p159
        %s318 = sand.u32 %s149, 1
        %s319 = scalar_lea.sflag [#allocation4], %s318
        %s320 = sand.u32 %s149, 1
        %s321 = smul.addr %s320, 16
        %s322 = scalar_lea.vmem [#allocation8], %s321
        %p323 = pneg %p190
        %p324 = pneg %p187
        %s325 = sand.u32 %s177, 1
        %s326 = scalar_lea.sflag [#allocation10], %s325
        %s327 = sand.u32 %s177, 1
        %s328 = smul.addr %s327, 16
        %s329 = scalar_lea.vmem [#allocation9], %s328
        %v331 = vld [vmem:[%s3] sm:$0x3]
        %v332 = vld [vmem:[%s277] sm:$0xf]
        %v333 = vld [vmem:[#allocation7] sm:$0xf]
        %v334 = vld [vmem:[#allocation7 + $0x4] sm:$0xf]
        %v335 = vld [vmem:[#allocation7 + $0x8] sm:$0xf]
        %v336 = vld [vmem:[#allocation7 + $0xc] sm:$0xf]
        %v337 = vperm.slane %v331, 0
        %v342 = vunpack.c.l.b16 %v333
        %v343 = vunpack.c.l.b16 %v334
        %v344 = vunpack.c.l.b16 %v335
        %v345 = vunpack.c.l.b16 %v336
        %v346 = vpack.c.b16 %v343, %v342
        %v347 = vpack.c.b16 %v345, %v344
        %vm350 = vcmask 261120
        %v352 = vsel %vm350, %v332, 0
        %354 = vmatpush.bf16.msra.mxu0 0
        %355 = vmatpush.bf16.msra.mxu0 0
        %356 = vmatpush.bf16.msra.mxu0 0
        %357 = vmatpush.bf16.msra.mxu0 0
        %358 = vmatpush.bf16.msra.mxu0 0
        %359 = vmatpush.bf16.msra.mxu0 0
        %360 = vmatpush.bf16.msra.mxu0 %v347
        %361 = vmatpush.bf16.msra.mxu0 %v346
        %362 = vmatmul.bf16.gmra.mxu0 %v352
        %v363 = vpop.f32.mrf.mxu0
        %v364 = vadd.f32 %v337, %v363
        %v365 = vpop.f32.mrf.mxu0
        %366 = vdwg.mxu0
        %368 = vrot.lane.b32.xlu0 %v364, 120
        %v369 = vpop.permute.xlu0 %368
        %371 = vrot.lane.b32.xlu0 %v364, 112
        %v372 = vpop.permute.xlu0 %371
        %374 = vrot.lane.b32.xlu0 %v364, 104
        %v375 = vpop.permute.xlu0 %374
        %v377 = vrot.slane %v372, 4
        %vm378 = vcmask 1047556
        %v379 = vsel %vm378, %v377, %v364
        %v380 = vrot.slane %v364, 4
        %v381 = vsel %vm378, %v372, %v380
        %v383 = vunpack.c.l.s4 1983009808
        %v384 = vunpack.c.0.s8 %v383
        %v385 = vperm.slane %v379, %v384
        %v387 = vunpack.c.l.s4 1983009808
        %v388 = vunpack.c.0.s8 %v387
        %v389 = vperm.slane %v381, %v388
        %v390 = vrot.slane %v375, 4
        %v391 = vsel %vm378, %v390, %v369
        %v392 = vrot.slane %v369, 4
        %v393 = vsel %vm378, %v375, %v392
        %v395 = vunpack.c.l.s4 1983009808
        %v396 = vunpack.c.0.s8 %v395
        %v397 = vperm.slane %v391, %v396
        %v399 = vunpack.c.l.s4 1983009808
        %v400 = vunpack.c.0.s8 %v399
        %v401 = vperm.slane %v393, %v400
        %v402 = vrot.slane %v397, 4
        %v403 = vsel %vm378, %v402, %v385
        %v404 = vrot.slane %v385, 4
        %v405 = vsel %vm378, %v397, %v404
        %v407 = vunpack.c.l.s4 1934713408
        %v408 = vunpack.c.0.s8 %v407
        %v409 = vperm.slane %v403, %v408
        %v411 = vunpack.c.l.s4 1934713408
        %v412 = vunpack.c.0.s8 %v411
        %v413 = vperm.slane %v405, %v412
        %v414 = vrot.slane %v401, 4
        %v415 = vsel %vm378, %v414, %v389
        %v416 = vrot.slane %v389, 4
        %v417 = vsel %vm378, %v401, %v416
        %v419 = vunpack.c.l.s4 1934713408
        %v420 = vunpack.c.0.s8 %v419
        %v421 = vperm.slane %v415, %v420
        %v423 = vunpack.c.l.s4 1934713408
        %v424 = vunpack.c.0.s8 %v423
        %v425 = vperm.slane %v417, %v424
        %v426 = vrot.slane %v409, 4
        %v427 = vsel %vm378, 0.0, %v426
        %v428 = vrot.slane %v413, 4
        %v429 = vsel %vm378, 0.0, %v428
        %v430 = vrot.slane %v421, 4
        %v431 = vsel %vm378, 0.0, %v430
        %v432 = vrot.slane %v425, 4
        %v433 = vsel %vm378, 0.0, %v432
        %v434 = vsel %vm378, %v428, %v409
        %v436 = vunpack.c.l.s4 1983009808
        %v437 = vunpack.c.0.s8 %v436
        %v438 = vperm.slane %v434, %v437
        %v439 = vrot.slane %v429, 4
        %v440 = vsel %vm378, %v439, %v427
        %v442 = vunpack.c.l.s4 1983009808
        %v443 = vunpack.c.0.s8 %v442
        %v444 = vperm.slane %v440, %v443
        %v445 = vsel %vm378, %v432, %v421
        %v447 = vunpack.c.l.s4 1983009808
        %v448 = vunpack.c.0.s8 %v447
        %v449 = vperm.slane %v445, %v448
        %v450 = vrot.slane %v433, 4
        %v451 = vsel %vm378, %v450, %v431
        %v453 = vunpack.c.l.s4 1983009808
        %v454 = vunpack.c.0.s8 %v453
        %v455 = vperm.slane %v451, %v454
        %v456 = vrot.slane %v444, 4
        %v457 = vsel %vm378, %v456, %v438
        %v458 = vrot.slane %v438, 4
        %v459 = vsel %vm378, %v444, %v458
        %v461 = vunpack.c.l.s4 1934713408
        %v462 = vunpack.c.0.s8 %v461
        %v463 = vperm.slane %v457, %v462
        %v465 = vunpack.c.l.s4 1934713408
        %v466 = vunpack.c.0.s8 %v465
        %v467 = vperm.slane %v459, %v466
        %v468 = vrot.slane %v455, 4
        %v469 = vsel %vm378, %v468, %v449
        %v470 = vrot.slane %v449, 4
        %v471 = vsel %vm378, %v455, %v470
        %v473 = vunpack.c.l.s4 1934713408
        %v474 = vunpack.c.0.s8 %v473
        %v475 = vperm.slane %v469, %v474
        %v477 = vunpack.c.l.s4 1934713408
        %v478 = vunpack.c.0.s8 %v477
        %v479 = vperm.slane %v471, %v478
        %v480 = vrot.slane %v475, 4
        %v481 = vsel %vm378, %v480, %v463
        %v482 = vrot.slane %v463, 4
        %v483 = vsel %vm378, %v475, %v482
        %v484 = vrot.slane %v479, 4
        %v485 = vsel %vm378, %v484, %v467
        %v486 = vrot.slane %v467, 4
        %v487 = vsel %vm378, %v479, %v486
        %v488 = vpack.c.bf16 %v481, %v481
        %v489 = vpack.c.bf16 %v483, %v483
        %v490 = vpack.c.bf16 %v485, %v485
        %v491 = vpack.c.bf16 %v487, %v487
        %vm492 = vcmask 60416
        %493 = vst.msk [vmem:[%s322] sm:$0xf] %vm492, %v488
        %494 = vst.msk [vmem:[%s322 + $0x4] sm:$0xf] %vm492, %v489
        %495 = vst.msk [vmem:[%s322 + $0x8] sm:$0xf] %vm492, %v490
        %496 = vst.msk [vmem:[%s322 + $0xc] sm:$0xf] %vm492, %v491
        %v497 = vld [vmem:[%s287] sm:$0xf]
        %s498 = scalar_lea.vmem [#allocation7], 16
        %v499 = vld [vmem:[%s498] sm:$0xf]
        %v500 = vld [vmem:[%s498 + $0x4] sm:$0xf]
        %v501 = vld [vmem:[%s498 + $0x8] sm:$0xf]
        %v502 = vld [vmem:[%s498 + $0xc] sm:$0xf]
        %v503 = vperm.slane %v331, 1
        %v508 = vunpack.c.l.b16 %v499
        %v509 = vunpack.c.l.b16 %v500
        %v510 = vunpack.c.l.b16 %v501
        %v511 = vunpack.c.l.b16 %v502
        %v512 = vpack.c.b16 %v509, %v508
        %v513 = vpack.c.b16 %v511, %v510
        %v517 = vsel %vm350, %v497, 0
        %519 = vmatpush.bf16.msra.mxu0 0
        %520 = vmatpush.bf16.msra.mxu0 0
        %521 = vmatpush.bf16.msra.mxu0 0
        %522 = vmatpush.bf16.msra.mxu0 0
        %523 = vmatpush.bf16.msra.mxu0 0
        %524 = vmatpush.bf16.msra.mxu0 0
        %525 = vmatpush.bf16.msra.mxu0 %v513
        %526 = vmatpush.bf16.msra.mxu0 %v512
        %527 = vmatmul.bf16.gmra.mxu0 %v517
        %v528 = vpop.f32.mrf.mxu0
        %v529 = vadd.f32 %v503, %v528
        %v530 = vpop.f32.mrf.mxu0
        %531 = vdwg.mxu0
        %533 = vrot.lane.b32.xlu0 %v529, 120
        %v534 = vpop.permute.xlu0 %533
        %536 = vrot.lane.b32.xlu0 %v529, 112
        %v537 = vpop.permute.xlu0 %536
        %539 = vrot.lane.b32.xlu0 %v529, 104
        %v540 = vpop.permute.xlu0 %539
        %v542 = vrot.slane %v537, 4
        %v543 = vsel %vm378, %v542, %v529
        %v544 = vrot.slane %v529, 4
        %v545 = vsel %vm378, %v537, %v544
        %v547 = vunpack.c.l.s4 1983009808
        %v548 = vunpack.c.0.s8 %v547
        %v549 = vperm.slane %v543, %v548
        %v551 = vunpack.c.l.s4 1983009808
        %v552 = vunpack.c.0.s8 %v551
        %v553 = vperm.slane %v545, %v552
        %v554 = vrot.slane %v540, 4
        %v555 = vsel %vm378, %v554, %v534
        %v556 = vrot.slane %v534, 4
        %v557 = vsel %vm378, %v540, %v556
        %v559 = vunpack.c.l.s4 1983009808
        %v560 = vunpack.c.0.s8 %v559
        %v561 = vperm.slane %v555, %v560
        %v563 = vunpack.c.l.s4 1983009808
        %v564 = vunpack.c.0.s8 %v563
        %v565 = vperm.slane %v557, %v564
        %v566 = vrot.slane %v561, 4
        %v567 = vsel %vm378, %v566, %v549
        %v568 = vrot.slane %v549, 4
        %v569 = vsel %vm378, %v561, %v568
        %v571 = vunpack.c.l.s4 1934713408
        %v572 = vunpack.c.0.s8 %v571
        %v573 = vperm.slane %v567, %v572
        %v575 = vunpack.c.l.s4 1934713408
        %v576 = vunpack.c.0.s8 %v575
        %v577 = vperm.slane %v569, %v576
        %v578 = vrot.slane %v565, 4
        %v579 = vsel %vm378, %v578, %v553
        %v580 = vrot.slane %v553, 4
        %v581 = vsel %vm378, %v565, %v580
        %v583 = vunpack.c.l.s4 1934713408
        %v584 = vunpack.c.0.s8 %v583
        %v585 = vperm.slane %v579, %v584
        %v587 = vunpack.c.l.s4 1934713408
        %v588 = vunpack.c.0.s8 %v587
        %v589 = vperm.slane %v581, %v588
        %v590 = vrot.slane %v573, 4
        %v591 = vsel %vm378, 0.0, %v590
        %v592 = vrot.slane %v577, 4
        %v593 = vsel %vm378, 0.0, %v592
        %v594 = vrot.slane %v585, 4
        %v595 = vsel %vm378, 0.0, %v594
        %v596 = vrot.slane %v589, 4
        %v597 = vsel %vm378, 0.0, %v596
        %v598 = vsel %vm378, %v592, %v573
        %v600 = vunpack.c.l.s4 1983009808
        %v601 = vunpack.c.0.s8 %v600
        %v602 = vperm.slane %v598, %v601
        %v603 = vrot.slane %v593, 4
        %v604 = vsel %vm378, %v603, %v591
        %v606 = vunpack.c.l.s4 1983009808
        %v607 = vunpack.c.0.s8 %v606
        %v608 = vperm.slane %v604, %v607
        %v609 = vsel %vm378, %v596, %v585
        %v611 = vunpack.c.l.s4 1983009808
        %v612 = vunpack.c.0.s8 %v611
        %v613 = vperm.slane %v609, %v612
        %v614 = vrot.slane %v597, 4
        %v615 = vsel %vm378, %v614, %v595
        %v617 = vunpack.c.l.s4 1983009808
        %v618 = vunpack.c.0.s8 %v617
        %v619 = vperm.slane %v615, %v618
        %v620 = vrot.slane %v608, 4
        %v621 = vsel %vm378, %v620, %v602
        %v622 = vrot.slane %v602, 4
        %v623 = vsel %vm378, %v608, %v622
        %v625 = vunpack.c.l.s4 1934713408
        %v626 = vunpack.c.0.s8 %v625
        %v627 = vperm.slane %v621, %v626
        %v629 = vunpack.c.l.s4 1934713408
        %v630 = vunpack.c.0.s8 %v629
        %v631 = vperm.slane %v623, %v630
        %v632 = vrot.slane %v619, 4
        %v633 = vsel %vm378, %v632, %v613
        %v634 = vrot.slane %v613, 4
        %v635 = vsel %vm378, %v619, %v634
        %v637 = vunpack.c.l.s4 1934713408
        %v638 = vunpack.c.0.s8 %v637
        %v639 = vperm.slane %v633, %v638
        %v641 = vunpack.c.l.s4 1934713408
        %v642 = vunpack.c.0.s8 %v641
        %v643 = vperm.slane %v635, %v642
        %v644 = vrot.slane %v639, 4
        %v645 = vsel %vm378, %v644, %v627
        %v646 = vrot.slane %v627, 4
        %v647 = vsel %vm378, %v639, %v646
        %v648 = vrot.slane %v643, 4
        %v649 = vsel %vm378, %v648, %v631
        %v650 = vrot.slane %v631, 4
        %v651 = vsel %vm378, %v643, %v650
        %v652 = vpack.c.bf16 %v645, %v645
        %v653 = vpack.c.bf16 %v647, %v647
        %v654 = vpack.c.bf16 %v649, %v649
        %v655 = vpack.c.bf16 %v651, %v651
        %656 = vst.msk [vmem:[%s329] sm:$0xf] %vm492, %v652
        %657 = vst.msk [vmem:[%s329 + $0x4] sm:$0xf] %vm492, %v653
        %658 = vst.msk [vmem:[%s329 + $0x8] sm:$0xf] %vm492, %v654
        %659 = vst.msk [vmem:[%s329 + $0xc] sm:$0xf] %vm492, %v655
        %s660 = sand.u32 %s149, 1
        %s661 = scalar_lea.sflag [#allocation4], %s660
        %s662 = sand.u32 %s149, 1
        %s663 = smul.addr %s662, 16
        %s664 = scalar_lea.vmem [#allocation8], %s663
        %s665 = sand.u32 %s177, 1
        %s666 = scalar_lea.sflag [#allocation10], %s665
        %s667 = sand.u32 %s177, 1
        %s668 = smul.addr %s667, 16
        %s669 = scalar_lea.vmem [#allocation9], %s668
        // Predicated region
        $region49: #{tpu_custom_call.1} parent=35 // pred_check
          %p670 = pneg %p159
        $region50: #{tpu_custom_call.1} parent=35 // pred_check_branch
          %672 = sbr.rel (%p670) target = $region52
        $region51: #{tpu_custom_call.1} parent=35 // pred_region
          %674 = vsyncadd %s661, 0
          %s675 = smul.addr %s33, 4
          %s676 = sadd.s32 %s34, %s675
          %s677 = smul.addr %s676, 4
          %s678 = scalar_lea.hbm %s4, %s677
          %s679 = sshll.u32 %s664, 4
          %s680 = int_to_ptr.vmem [resolvable:$true] %s679
          %s681 = sshll.u32 %s678, 4
          %s682 = int_to_ptr.hbm [resolvable:$true] %s681
          %687 = dma.vmem_to_hbm [thread:$0]  %s680, 256, %s682, %s661, 64, 64, 4
        $region52: #{tpu_custom_call.1} parent=35 // pred_fallthru
          _
        // Predicated region
        $region53: #{tpu_custom_call.1} parent=35 // pred_check
          %p688 = pneg %p187
        $region54: #{tpu_custom_call.1} parent=35 // pred_check_branch
          %690 = sbr.rel (%p688) target = $region56
        $region55: #{tpu_custom_call.1} parent=35 // pred_region
          %692 = vsyncadd %s666, 0
          %s693 = smul.addr %s33, 4
          %s694 = sadd.s32 %s34, %s693
          %s695 = smul.addr %s694, 4
          %s696 = scalar_lea.hbm %s5, %s695
          %s697 = sshll.u32 %s669, 4
          %s698 = int_to_ptr.vmem [resolvable:$true] %s697
          %s699 = sshll.u32 %s696, 4
          %s700 = int_to_ptr.hbm [resolvable:$true] %s699
          %705 = dma.vmem_to_hbm [thread:$0]  %s698, 256, %s700, %s666, 64, 64, 4
        $region56: #{tpu_custom_call.1} parent=35 // pred_fallthru
          _
      $region36: #{tpu_custom_call.1} parent=5 // pred_fallthru
        _
      %p706 = scmp.le.s32.totalorder 2, %s24
      // Predicated region
      $region57: #{tpu_custom_call.1} parent=5 // pred_check
        %p707 = pneg %p706
      $region58: #{tpu_custom_call.1} parent=5 // pred_check_branch
        %709 = sbr.rel (%p707) target = $region60
      $region59: #{tpu_custom_call.1} parent=5 // pred_region
        %s710 = ssub.s32 %s24, 2
        // Predicated region
        $region61: #{tpu_custom_call.1} parent=59 // pred_check
          %p711 = pneg %p165
        $region62: #{tpu_custom_call.1} parent=59 // pred_check_branch
          %713 = sbr.rel (%p711) target = $region64
        $region63: #{tpu_custom_call.1} parent=59 // pred_region
          %s714 = sand.u32 %s150, 1
          %s715 = scalar_lea.sflag [#allocation4], %s714
          %s716 = sand.u32 %s150, 1
          %s717 = smul.addr %s716, 16
          %s718 = scalar_lea.vmem [#allocation8], %s717
          %720 = dma.done %s715, 256
        $region64: #{tpu_custom_call.1} parent=59 // pred_fallthru
          _
        // Predicated region
        $region65: #{tpu_custom_call.1} parent=59 // pred_check
          %p721 = pneg %p193
        $region66: #{tpu_custom_call.1} parent=59 // pred_check_branch
          %723 = sbr.rel (%p721) target = $region68
        $region67: #{tpu_custom_call.1} parent=59 // pred_region
          %s724 = sand.u32 %s178, 1
          %s725 = scalar_lea.sflag [#allocation10], %s724
          %s726 = sand.u32 %s178, 1
          %s727 = smul.addr %s726, 16
          %s728 = scalar_lea.vmem [#allocation9], %s727
          %730 = dma.done %s725, 256
        $region68: #{tpu_custom_call.1} parent=59 // pred_fallthru
          _
      $region60: #{tpu_custom_call.1} parent=5 // pred_fallthru
        _
    $region6: #{tpu_custom_call.1} parent=1 // loop_footer
      %s28 = sadd.s32 1, %s24
    $region7: #{tpu_custom_call.1} parent=1 // loop_footer_branch
      %23 = sbr.rel target = $region3
    $region8: #{tpu_custom_call.1} parent=1 // loop_exit
      _
    %731 = vsyncpa [#allocation3], 1
    %s732 = scalar_lea.sflag [#allocation3], 1
    %733 = vsyncpa %s732, 1
    %734 = vsyncpa [#allocation6], 1
    %s735 = scalar_lea.sflag [#allocation6], 1
    %736 = vsyncpa %s735, 1
    %737 = vsyncpa [#allocation4], 1
    %s738 = scalar_lea.sflag [#allocation4], 1
    %739 = vsyncpa %s738, 1
    %740 = vsyncpa [#allocation10], 1
    %s741 = scalar_lea.sflag [#allocation10], 1
    %742 = vsyncpa %s741, 1

</llo_original>
